<compile_context>
chip_gen: v6e
topology: v6e:2x2x1
jax: 0.10.0
libtpu: 0.0.40
codegen_flags: <defaults>
</compile_context>

<pallas_src>
import numpy as np
import jax
import jax.numpy as jnp
from jax.experimental import pallas as pl
from jax.experimental.pallas import tpu as pltpu

# ----------------------------- model hyper-parameters -----------------------------
VOCAB = 64        # vocab_size
VOCAB_PAD = 128   # vocab padded to a full 128-lane slab for the output matmul/store
EMBED_DIM = 32    # embedding_dim
HIDDEN = 32       # hidden_dim (must equal EMBED_DIM for the residual connection)
NUM_LAYERS = 2    # num_layers (dilations 1, 2)
KSIZE = 3         # kernel_size
MAX_SEQ = 16      # max_seq_len
BATCH = 2
SEQ = 16
LN_EPS = 1e-5
BS = BATCH * SEQ

assert HIDDEN == EMBED_DIM, "residual connection requires hidden_dim == embedding_dim"


# ----------------------------------- kernel ---------------------------------------
def _cnn_lm_kernel(tok_ref, emb_ref, pos_ref, wv_ref, wg_ref, bv_ref, bg_ref,
                   g_ref, be_ref, fcw_ref, fcb_ref, out_ref):
    # tok_ref:  (B*S, 1)  int32      token ids
    # emb_ref:  (V, E)    f32        embedding table
    # pos_ref:  (B*S, E)  f32        positional encoding, pre-tiled over the batch
    # wv_ref:   (L, K, E, H) bf16    conv value-half weights, one (E,H) matrix per tap
    # wg_ref:   (L, K, E, H) bf16    conv gate-half weights
    # bv_ref/bg_ref: (L, 1, H) f32   conv bias halves
    # g_ref/be_ref:  (L, 1, H) f32   LayerNorm gamma / beta
    # fcw_ref:  (H, VOCAB_PAD) bf16  zero-padded output projection
    # fcb_ref:  (1, VOCAB_PAD) f32   bias; pad columns = -1e30
    # out_ref:  (B, S, VOCAB_PAD)

    # Embedding lookup as a one-hot MXU matmul (exact in f32), + positional encoding.
    tok = tok_ref[...]                                                    # (BS, 1)
    vocab_iota = jax.lax.broadcasted_iota(jnp.int32, (BS, VOCAB), 1)
    one_hot = (vocab_iota == tok).astype(jnp.float32)                     # (BS, V)
    x = jnp.dot(one_hot, emb_ref[...], preferred_element_type=jnp.float32)
    x = x + pos_ref[...]                                                  # (BS, E)

    # Per-row sequence position, used to zero taps that would cross a batch boundary
    # when rolling the flattened (B*S, E) activations along the row (sublane) axis.
    s_idx = jax.lax.broadcasted_iota(jnp.int32, (BS, 1), 0) % SEQ

    masks = {}   # per-delay boundary masks, built once at trace time
    for l in range(NUM_LAYERS):
        d = 2 ** l
        acc_v = jnp.zeros((BS, HIDDEN), jnp.float32)
        acc_g = jnp.zeros((BS, HIDDEN), jnp.float32)
        for j in range(KSIZE):
            delay = (KSIZE - 1 - j) * d          # tap j reads x[t - delay]
            if delay == 0:
                tap = x
            else:
                if delay not in masks:
                    masks[delay] = (s_idx >= delay).astype(jnp.float32)
                # rolled[r] = x[r - delay]; rows with s < delay are causal zero pad
                tap = pltpu.roll(x, shift=delay, axis=0) * masks[delay]
            tap_bf = tap.astype(jnp.bfloat16)
            acc_v += jnp.dot(tap_bf, wv_ref[l, j], preferred_element_type=jnp.float32)
            acc_g += jnp.dot(tap_bf, wg_ref[l, j], preferred_element_type=jnp.float32)
        acc_v += bv_ref[l]
        acc_g += bg_ref[l]
        # GLU over channels (== F.glu(out, dim=1) in the NCW reference), no lane slicing
        glu = acc_v * jax.nn.sigmoid(acc_g)                               # (BS, H)
        # LayerNorm over channels, two-pass (centered) variance
        mean = jnp.mean(glu, axis=-1, keepdims=True)
        cen = glu - mean
        var = jnp.mean(cen * cen, axis=-1, keepdims=True)
        normed = cen * jax.lax.rsqrt(var + LN_EPS)
        # scale/shift + residual (valid because HIDDEN == EMBED_DIM)
        x = normed * g_ref[l] + be_ref[l] + x                             # (BS, E)

    # final vocab projection; VOCAB padded to 128 lanes -> full-lane unmasked store
    logits = jnp.dot(x.astype(jnp.bfloat16), fcw_ref[...],
                     preferred_element_type=jnp.float32) + fcb_ref[...]
    out_ref[...] = logits.reshape(BATCH, SEQ, VOCAB_PAD)


# ------------------------- one-time parameter repacking ----------------------------
def prepare_fused_params(p):
    """Hoisted out of the per-call path: executed once, results reused every forward."""
    w = p["conv_w"]                                                       # (L, 2H, E, K)
    # value half = out channels [:H], gate half = [H:]; one (E, H) matrix per tap.
    wv = jnp.transpose(w[:, :HIDDEN, :, :], (0, 3, 2, 1)).astype(jnp.bfloat16)
    wg = jnp.transpose(w[:, HIDDEN:, :, :], (0, 3, 2, 1)).astype(jnp.bfloat16)
    bv = p["conv_b"][:, :HIDDEN][:, None, :].astype(jnp.float32)          # (L, 1, H)
    bg = p["conv_b"][:, HIDDEN:][:, None, :].astype(jnp.float32)
    g = p["ln_g"][:, None, :].astype(jnp.float32)                         # (L, 1, H)
    be = p["ln_b"][:, None, :].astype(jnp.float32)
    # lane-dense output projection: zero-pad VOCAB -> VOCAB_PAD weight columns,
    # pad bias columns to -1e30 so they can never win a softmax/argmax downstream.
    fcw = (jnp.zeros((HIDDEN, VOCAB_PAD), jnp.float32)
           .at[:, :VOCAB].set(p["fc_w"].T).astype(jnp.bfloat16))
    fcb = (jnp.full((1, VOCAB_PAD), -1e30, jnp.float32)
           .at[:, :VOCAB].set(p["fc_b"][None, :]))
    pos_bs = jnp.tile(p["pos"][0, :SEQ, :], (BATCH, 1)).astype(jnp.float32)  # (BS, E)
    return {"emb": p["emb"].astype(jnp.float32), "pos": pos_bs,
            "wv": wv, "wg": wg, "bv": bv, "bg": bg, "g": g, "be": be,
            "fcw": fcw, "fcb": fcb}


# ----------------------------------- wrapper ---------------------------------------
@jax.jit
def cnn_lm_forward_pallas(tokens, fp):
    B, S = tokens.shape
    assert B == BATCH and S == SEQ
    tok2d = tokens.reshape(B * S, 1).astype(jnp.int32)   # metadata-only reshape

    def full(shape):  # whole-array block for the single grid step
        n = len(shape)
        return pl.BlockSpec(tuple(shape), lambda i, _n=n: (0,) * _n)

    grid_spec = pltpu.PrefetchScalarGridSpec(
        num_scalar_prefetch=0,
        grid=(1,),                         # single invocation: whole batch at once
        in_specs=[full(tok2d.shape), full(fp["emb"].shape), full(fp["pos"].shape),
                  full(fp["wv"].shape), full(fp["wg"].shape),
                  full(fp["bv"].shape), full(fp["bg"].shape),
                  full(fp["g"].shape), full(fp["be"].shape),
                  full(fp["fcw"].shape), full(fp["fcb"].shape)],
        out_specs=full((B, S, VOCAB_PAD)),
    )
    # Returns the 128-lane padded logits; real vocab columns are [:, :, :VOCAB].
    return pl.pallas_call(
        _cnn_lm_kernel,
        out_shape=jax.ShapeDtypeStruct((B, S, VOCAB_PAD), jnp.float32),
        grid_spec=grid_spec,
        compiler_params=pltpu.CompilerParams(dimension_semantics=("arbitrary",)),
    )(tok2d, fp["emb"], fp["pos"], fp["wv"], fp["wg"], fp["bv"], fp["bg"],
      fp["g"], fp["be"], fp["fcw"], fp["fcb"])


# ------------------------------ pure-JAX reference ---------------------------------
def reference_forward(tokens, p):
    S = tokens.shape[1]
    x = p["emb"][tokens] + p["pos"][:, :S, :]                            # [B, S, E]
    x = jnp.transpose(x, (0, 2, 1))                                      # [B, E, S]
    for l in range(NUM_LAYERS):
        d = 2 ** l
        pad = (KSIZE - 1) * d
        residual = x
        out = jax.lax.conv_general_dilated(
            x, p["conv_w"][l], window_strides=(1,), padding=[(pad, pad)],
            rhs_dilation=(d,), dimension_numbers=("NCH", "OIH", "NCH"))
        out = out + p["conv_b"][l][None, :, None]
        out = out[:, :, :-pad]
        a, b = out[:, :HIDDEN, :], out[:, HIDDEN:, :]
        out = a * jax.nn.sigmoid(b)
        h = jnp.transpose(out, (0, 2, 1))
        mean = h.mean(-1, keepdims=True)
        var = ((h - mean) ** 2).mean(-1, keepdims=True)
        h = (h - mean) / jnp.sqrt(var + LN_EPS) * p["ln_g"][l] + p["ln_b"][l]
        out = jnp.transpose(h, (0, 2, 1))
        x = out + residual
    x = jnp.transpose(x, (0, 2, 1))                                      # [B, S, H]
    return x @ p["fc_w"].T + p["fc_b"]                                   # [B, S, V]


# --------------------------------- param init --------------------------------------
def init_params(key):
    ks = jax.random.split(key, 8)
    return {
        "emb":    jax.random.normal(ks[0], (VOCAB, EMBED_DIM), jnp.float32) * 0.1,
        "pos":    jax.random.normal(ks[1], (1, MAX_SEQ, EMBED_DIM), jnp.float32) * 0.02,
        "conv_w": jax.random.normal(ks[2], (NUM_LAYERS, 2 * HIDDEN, EMBED_DIM, KSIZE),
                                    jnp.float32) * 0.1,
        "conv_b": jax.random.normal(ks[3], (NUM_LAYERS, 2 * HIDDEN), jnp.float32) * 0.1,
        "ln_g":   jnp.ones((NUM_LAYERS, HIDDEN), jnp.float32)
                  + 0.05 * jax.random.normal(ks[4], (NUM_LAYERS, HIDDEN), jnp.float32),
        "ln_b":   0.05 * jax.random.normal(ks[5], (NUM_LAYERS, HIDDEN), jnp.float32),
        "fc_w":   jax.random.normal(ks[6], (VOCAB, HIDDEN), jnp.float32) * 0.1,
        "fc_b":   jax.random.normal(ks[7], (VOCAB,), jnp.float32) * 0.1,
    }


if __name__ == "__main__":
    key = jax.random.PRNGKey(0)
    pkey, tkey = jax.random.split(key)
    params = init_params(pkey)
    fused = prepare_fused_params(params)        # one-time weight fusion (hoisted)
    tokens = jax.random.randint(tkey, (BATCH, SEQ), 0, VOCAB, dtype=jnp.int32)

    out_pad = jax.block_until_ready(cnn_lm_forward_pallas(tokens, fused))
    ref = jax.block_until_ready(reference_forward(tokens, params))

    assert out_pad.shape == (BATCH, SEQ, VOCAB_PAD), out_pad.shape
    out = np.asarray(out_pad)[:, :, :VOCAB]     # harness-side slice for comparison only
    np.testing.assert_allclose(out, np.asarray(ref), rtol=3e-2, atol=3e-2)
    print("KERNEL_OK")
</pallas_src>

<mosaic_0001>
module attributes {stable_mosaic.version = 11 : i64} {
  func.func @_cnn_lm_kernel(%arg0: i32, %arg1: memref<32x1xi32, #tpu.memory_space<vmem>>, %arg2: memref<64x32xf32, #tpu.memory_space<vmem>>, %arg3: memref<32x32xf32, #tpu.memory_space<vmem>>, %arg4: memref<2x3x32x32xbf16, #tpu.memory_space<vmem>>, %arg5: memref<2x3x32x32xbf16, #tpu.memory_space<vmem>>, %arg6: memref<2x1x32xf32, #tpu.memory_space<vmem>>, %arg7: memref<2x1x32xf32, #tpu.memory_space<vmem>>, %arg8: memref<2x1x32xf32, #tpu.memory_space<vmem>>, %arg9: memref<2x1x32xf32, #tpu.memory_space<vmem>>, %arg10: memref<32x128xbf16, #tpu.memory_space<vmem>>, %arg11: memref<1x128xf32, #tpu.memory_space<vmem>>, %arg12: memref<2x16x128xf32, #tpu.memory_space<vmem>>) attributes {dimension_semantics = [#tpu.dimension_semantics<arbitrary>], iteration_bounds = array<i64: 1>, scalar_prefetch = 0 : i64, scratch_operands = 0 : i64, tpu.core_type = #tpu.core_type<tc>, window_params = [{pipeline_mode = #tpu.pipeline_mode<synchronous>, transform_indices = @transform_0, window_bounds = array<i64: 32, 1>}, {pipeline_mode = #tpu.pipeline_mode<synchronous>, transform_indices = @transform_1, window_bounds = array<i64: 64, 32>}, {pipeline_mode = #tpu.pipeline_mode<synchronous>, transform_indices = @transform_2, window_bounds = array<i64: 32, 32>}, {pipeline_mode = #tpu.pipeline_mode<synchronous>, transform_indices = @transform_3, window_bounds = array<i64: 2, 3, 32, 32>}, {pipeline_mode = #tpu.pipeline_mode<synchronous>, transform_indices = @transform_4, window_bounds = array<i64: 2, 3, 32, 32>}, {pipeline_mode = #tpu.pipeline_mode<synchronous>, transform_indices = @transform_5, window_bounds = array<i64: 2, 1, 32>}, {pipeline_mode = #tpu.pipeline_mode<synchronous>, transform_indices = @transform_6, window_bounds = array<i64: 2, 1, 32>}, {pipeline_mode = #tpu.pipeline_mode<synchronous>, transform_indices = @transform_7, window_bounds = array<i64: 2, 1, 32>}, {pipeline_mode = #tpu.pipeline_mode<synchronous>, transform_indices = @transform_8, window_bounds = array<i64: 2, 1, 32>}, {pipeline_mode = #tpu.pipeline_mode<synchronous>, transform_indices = @transform_9, window_bounds = array<i64: 32, 128>}, {pipeline_mode = #tpu.pipeline_mode<synchronous>, transform_indices = @transform_10, window_bounds = array<i64: 1, 128>}, {pipeline_mode = #tpu.pipeline_mode<synchronous>, transform_indices = @transform_11, window_bounds = array<i64: 2, 16, 128>}]} {
    %c0 = arith.constant 0 : index
    %c0_0 = arith.constant 0 : index
    %0 = vector.load %arg1[%c0, %c0_0] : memref<32x1xi32, #tpu.memory_space<vmem>>, vector<32x1xi32>
    %1 = tpu.iota {dimensions = array<i32: 1>} : vector<32x64xi32>
    %2 = vector.broadcast %0 : vector<32x1xi32> to vector<32x64xi32>
    %3 = arith.cmpi eq, %1, %2 : vector<32x64xi32>
    %4 = arith.extui %3 : vector<32x64xi1> to vector<32x64xi32>
    %5 = arith.sitofp %4 : vector<32x64xi32> to vector<32x64xf32>
    %c0_1 = arith.constant 0 : index
    %c0_2 = arith.constant 0 : index
    %6 = vector.load %arg2[%c0_1, %c0_2] : memref<64x32xf32, #tpu.memory_space<vmem>>, vector<64x32xf32>
    %cst = arith.constant dense<0.000000e+00> : vector<32x32xf32>
    %7 = tpu.matmul %5, %6, %cst {dimension_numbers = #tpu.dot_dimension_numbers<[1], [0], [0], [1], [0, 0, 1, 1], [], []>} : vector<32x64xf32>, vector<64x32xf32>, vector<32x32xf32> -> vector<32x32xf32>
    %c0_3 = arith.constant 0 : index
    %c0_4 = arith.constant 0 : index
    %8 = vector.load %arg3[%c0_3, %c0_4] : memref<32x32xf32, #tpu.memory_space<vmem>>, vector<32x32xf32>
    %9 = arith.addf %7, %8 : vector<32x32xf32>
    %10 = tpu.iota {dimensions = array<i32: 0>} : vector<32x1xi32>
    %c16_i32 = arith.constant 16 : i32
    %c0_i32 = arith.constant 0 : i32
    %11 = arith.cmpi eq, %c16_i32, %c0_i32 : i32
    %c1_i32 = arith.constant 1 : i32
    %12 = arith.select %11, %c1_i32, %c16_i32 : i32
    %13 = vector.broadcast %12 : i32 to vector<32x1xi32>
    %14 = arith.remsi %10, %13 : vector<32x1xi32>
    %c0_i32_5 = arith.constant 0 : i32
    %15 = vector.broadcast %c0_i32_5 : i32 to vector<32x1xi32>
    %16 = arith.cmpi ne, %14, %15 : vector<32x1xi32>
    %c0_i32_6 = arith.constant 0 : i32
    %17 = vector.broadcast %c0_i32_6 : i32 to vector<32x1xi32>
    %18 = arith.cmpi slt, %14, %17 : vector<32x1xi32>
    %c0_i32_7 = arith.constant 0 : i32
    %19 = arith.cmpi slt, %12, %c0_i32_7 : i32
    %20 = vector.broadcast %19 : i1 to vector<32x1xi1>
    %21 = vector.broadcast %20 : vector<32x1xi1> to vector<32x1xi1>
    %22 = arith.xori %18, %21 : vector<32x1xi1>
    %23 = arith.andi %22, %16 : vector<32x1xi1>
    %24 = vector.broadcast %12 : i32 to vector<32x1xi32>
    %25 = arith.addi %14, %24 : vector<32x1xi32>
    %26 = arith.select %23, %25, %14 : vector<32x1xi1>, vector<32x1xi32>
    %cst_8 = arith.constant 0.000000e+00 : f32
    %27 = vector.broadcast %cst_8 : f32 to vector<32x32xf32>
    %cst_9 = arith.constant 0.000000e+00 : f32
    %28 = vector.broadcast %cst_9 : f32 to vector<32x32xf32>
    %c2_i32 = arith.constant 2 : i32
    %29 = vector.broadcast %c2_i32 : i32 to vector<32x1xi32>
    %30 = arith.cmpi sge, %26, %29 : vector<32x1xi32>
    %31 = arith.extui %30 : vector<32x1xi1> to vector<32x1xi32>
    %32 = arith.sitofp %31 : vector<32x1xi32> to vector<32x1xf32>
    %c2_i32_10 = arith.constant 2 : i32
    %33 = tpu.dynamic_rotate %9 by %c2_i32_10 dim 0 : vector<32x32xf32>, i32 -> vector<32x32xf32>
    %34 = vector.broadcast %32 : vector<32x1xf32> to vector<32x32xf32>
    %35 = arith.mulf %33, %34 : vector<32x32xf32>
    %36 = arith.truncf %35 : vector<32x32xf32> to vector<32x32xbf16>
    %c0_11 = arith.constant 0 : index
    %c0_12 = arith.constant 0 : index
    %c0_13 = arith.constant 0 : index
    %c0_14 = arith.constant 0 : index
    %37 = vector.load %arg4[%c0_11, %c0_12, %c0_13, %c0_14] : memref<2x3x32x32xbf16, #tpu.memory_space<vmem>>, vector<1x1x32x32xbf16>
    %38 = vector.shape_cast %37 : vector<1x1x32x32xbf16> to vector<32x32xbf16>
    %cst_15 = arith.constant dense<0.000000e+00> : vector<32x32xf32>
    %39 = tpu.matmul %36, %38, %cst_15 {dimension_numbers = #tpu.dot_dimension_numbers<[1], [0], [0], [1], [0, 0, 1, 1], [], []>} : vector<32x32xbf16>, vector<32x32xbf16>, vector<32x32xf32> -> vector<32x32xf32>
    %40 = arith.addf %27, %39 : vector<32x32xf32>
    %c0_16 = arith.constant 0 : index
    %c0_17 = arith.constant 0 : index
    %c0_18 = arith.constant 0 : index
    %c0_19 = arith.constant 0 : index
    %41 = vector.load %arg5[%c0_16, %c0_17, %c0_18, %c0_19] : memref<2x3x32x32xbf16, #tpu.memory_space<vmem>>, vector<1x1x32x32xbf16>
    %42 = vector.shape_cast %41 : vector<1x1x32x32xbf16> to vector<32x32xbf16>
    %cst_20 = arith.constant dense<0.000000e+00> : vector<32x32xf32>
    %43 = tpu.matmul %36, %42, %cst_20 {dimension_numbers = #tpu.dot_dimension_numbers<[1], [0], [0], [1], [0, 0, 1, 1], [], []>} : vector<32x32xbf16>, vector<32x32xbf16>, vector<32x32xf32> -> vector<32x32xf32>
    %44 = arith.addf %28, %43 : vector<32x32xf32>
    %c1_i32_21 = arith.constant 1 : i32
    %45 = vector.broadcast %c1_i32_21 : i32 to vector<32x1xi32>
    %46 = arith.cmpi sge, %26, %45 : vector<32x1xi32>
    %47 = arith.extui %46 : vector<32x1xi1> to vector<32x1xi32>
    %48 = arith.sitofp %47 : vector<32x1xi32> to vector<32x1xf32>
    %c1_i32_22 = arith.constant 1 : i32
    %49 = tpu.dynamic_rotate %9 by %c1_i32_22 dim 0 : vector<32x32xf32>, i32 -> vector<32x32xf32>
    %50 = vector.broadcast %48 : vector<32x1xf32> to vector<32x32xf32>
    %51 = arith.mulf %49, %50 : vector<32x32xf32>
    %52 = arith.truncf %51 : vector<32x32xf32> to vector<32x32xbf16>
    %c0_23 = arith.constant 0 : index
    %c1 = arith.constant 1 : index
    %c0_24 = arith.constant 0 : index
    %c0_25 = arith.constant 0 : index
    %53 = vector.load %arg4[%c0_23, %c1, %c0_24, %c0_25] : memref<2x3x32x32xbf16, #tpu.memory_space<vmem>>, vector<1x1x32x32xbf16>
    %54 = vector.shape_cast %53 : vector<1x1x32x32xbf16> to vector<32x32xbf16>
    %cst_26 = arith.constant dense<0.000000e+00> : vector<32x32xf32>
    %55 = tpu.matmul %52, %54, %cst_26 {dimension_numbers = #tpu.dot_dimension_numbers<[1], [0], [0], [1], [0, 0, 1, 1], [], []>} : vector<32x32xbf16>, vector<32x32xbf16>, vector<32x32xf32> -> vector<32x32xf32>
    %56 = arith.addf %40, %55 : vector<32x32xf32>
    %c0_27 = arith.constant 0 : index
    %c1_28 = arith.constant 1 : index
    %c0_29 = arith.constant 0 : index
    %c0_30 = arith.constant 0 : index
    %57 = vector.load %arg5[%c0_27, %c1_28, %c0_29, %c0_30] : memref<2x3x32x32xbf16, #tpu.memory_space<vmem>>, vector<1x1x32x32xbf16>
    %58 = vector.shape_cast %57 : vector<1x1x32x32xbf16> to vector<32x32xbf16>
    %cst_31 = arith.constant dense<0.000000e+00> : vector<32x32xf32>
    %59 = tpu.matmul %52, %58, %cst_31 {dimension_numbers = #tpu.dot_dimension_numbers<[1], [0], [0], [1], [0, 0, 1, 1], [], []>} : vector<32x32xbf16>, vector<32x32xbf16>, vector<32x32xf32> -> vector<32x32xf32>
    %60 = arith.addf %44, %59 : vector<32x32xf32>
    %61 = arith.truncf %9 : vector<32x32xf32> to vector<32x32xbf16>
    %c0_32 = arith.constant 0 : index
    %c2 = arith.constant 2 : index
    %c0_33 = arith.constant 0 : index
    %c0_34 = arith.constant 0 : index
    %62 = vector.load %arg4[%c0_32, %c2, %c0_33, %c0_34] : memref<2x3x32x32xbf16, #tpu.memory_space<vmem>>, vector<1x1x32x32xbf16>
    %63 = vector.shape_cast %62 : vector<1x1x32x32xbf16> to vector<32x32xbf16>
    %cst_35 = arith.constant dense<0.000000e+00> : vector<32x32xf32>
    %64 = tpu.matmul %61, %63, %cst_35 {dimension_numbers = #tpu.dot_dimension_numbers<[1], [0], [0], [1], [0, 0, 1, 1], [], []>} : vector<32x32xbf16>, vector<32x32xbf16>, vector<32x32xf32> -> vector<32x32xf32>
    %65 = arith.addf %56, %64 : vector<32x32xf32>
    %c0_36 = arith.constant 0 : index
    %c2_37 = arith.constant 2 : index
    %c0_38 = arith.constant 0 : index
    %c0_39 = arith.constant 0 : index
    %66 = vector.load %arg5[%c0_36, %c2_37, %c0_38, %c0_39] : memref<2x3x32x32xbf16, #tpu.memory_space<vmem>>, vector<1x1x32x32xbf16>
    %67 = vector.shape_cast %66 : vector<1x1x32x32xbf16> to vector<32x32xbf16>
    %cst_40 = arith.constant dense<0.000000e+00> : vector<32x32xf32>
    %68 = tpu.matmul %61, %67, %cst_40 {dimension_numbers = #tpu.dot_dimension_numbers<[1], [0], [0], [1], [0, 0, 1, 1], [], []>} : vector<32x32xbf16>, vector<32x32xbf16>, vector<32x32xf32> -> vector<32x32xf32>
    %69 = arith.addf %60, %68 : vector<32x32xf32>
    %c0_41 = arith.constant 0 : index
    %c0_42 = arith.constant 0 : index
    %c0_43 = arith.constant 0 : index
    %70 = vector.load %arg6[%c0_41, %c0_42, %c0_43] : memref<2x1x32xf32, #tpu.memory_space<vmem>>, vector<1x1x32xf32>
    %71 = vector.shape_cast %70 : vector<1x1x32xf32> to vector<1x32xf32>
    %72 = vector.broadcast %71 : vector<1x32xf32> to vector<32x32xf32>
    %73 = arith.addf %65, %72 : vector<32x32xf32>
    %c0_44 = arith.constant 0 : index
    %c0_45 = arith.constant 0 : index
    %c0_46 = arith.constant 0 : index
    %74 = vector.load %arg7[%c0_44, %c0_45, %c0_46] : memref<2x1x32xf32, #tpu.memory_space<vmem>>, vector<1x1x32xf32>
    %75 = vector.shape_cast %74 : vector<1x1x32xf32> to vector<1x32xf32>
    %76 = vector.broadcast %75 : vector<1x32xf32> to vector<32x32xf32>
    %77 = arith.addf %69, %76 : vector<32x32xf32>
    %78 = arith.negf %77 : vector<32x32xf32>
    %79 = math.exp %78 : vector<32x32xf32>
    %cst_47 = arith.constant 1.000000e+00 : f32
    %80 = vector.broadcast %cst_47 : f32 to vector<32x32xf32>
    %81 = arith.addf %80, %79 : vector<32x32xf32>
    %82 = arith.divf %80, %81 : vector<32x32xf32>
    %83 = arith.mulf %73, %82 : vector<32x32xf32>
    %cst_48 = arith.constant dense<0.000000e+00> : vector<32xf32>
    %84 = vector.multi_reduction <add>, %83, %cst_48 [1] : vector<32x32xf32> to vector<32xf32>
    %85 = vector.shape_cast %84 : vector<32xf32> to vector<32x1xf32>
    %cst_49 = arith.constant 3.200000e+01 : f32
    %86 = vector.broadcast %cst_49 : f32 to vector<32x1xf32>
    %87 = arith.divf %85, %86 : vector<32x1xf32>
    %88 = vector.broadcast %87 : vector<32x1xf32> to vector<32x32xf32>
    %89 = arith.subf %83, %88 : vector<32x32xf32>
    %90 = arith.mulf %89, %89 : vector<32x32xf32>
    %cst_50 = arith.constant dense<0.000000e+00> : vector<32xf32>
    %91 = vector.multi_reduction <add>, %90, %cst_50 [1] : vector<32x32xf32> to vector<32xf32>
    %92 = vector.shape_cast %91 : vector<32xf32> to vector<32x1xf32>
    %cst_51 = arith.constant 3.200000e+01 : f32
    %93 = vector.broadcast %cst_51 : f32 to vector<32x1xf32>
    %94 = arith.divf %92, %93 : vector<32x1xf32>
    %cst_52 = arith.constant 9.99999974E-6 : f32
    %95 = vector.broadcast %cst_52 : f32 to vector<32x1xf32>
    %96 = arith.addf %94, %95 : vector<32x1xf32>
    %97 = math.rsqrt %96 : vector<32x1xf32>
    %98 = vector.broadcast %97 : vector<32x1xf32> to vector<32x32xf32>
    %99 = arith.mulf %89, %98 : vector<32x32xf32>
    %c0_53 = arith.constant 0 : index
    %c0_54 = arith.constant 0 : index
    %c0_55 = arith.constant 0 : index
    %100 = vector.load %arg8[%c0_53, %c0_54, %c0_55] : memref<2x1x32xf32, #tpu.memory_space<vmem>>, vector<1x1x32xf32>
    %101 = vector.shape_cast %100 : vector<1x1x32xf32> to vector<1x32xf32>
    %102 = vector.broadcast %101 : vector<1x32xf32> to vector<32x32xf32>
    %103 = arith.mulf %99, %102 : vector<32x32xf32>
    %c0_56 = arith.constant 0 : index
    %c0_57 = arith.constant 0 : index
    %c0_58 = arith.constant 0 : index
    %104 = vector.load %arg9[%c0_56, %c0_57, %c0_58] : memref<2x1x32xf32, #tpu.memory_space<vmem>>, vector<1x1x32xf32>
    %105 = vector.shape_cast %104 : vector<1x1x32xf32> to vector<1x32xf32>
    %106 = vector.broadcast %105 : vector<1x32xf32> to vector<32x32xf32>
    %107 = arith.addf %103, %106 : vector<32x32xf32>
    %108 = arith.addf %107, %9 : vector<32x32xf32>
    %cst_59 = arith.constant 0.000000e+00 : f32
    %109 = vector.broadcast %cst_59 : f32 to vector<32x32xf32>
    %cst_60 = arith.constant 0.000000e+00 : f32
    %110 = vector.broadcast %cst_60 : f32 to vector<32x32xf32>
    %c4_i32 = arith.constant 4 : i32
    %111 = vector.broadcast %c4_i32 : i32 to vector<32x1xi32>
    %112 = arith.cmpi sge, %26, %111 : vector<32x1xi32>
    %113 = arith.extui %112 : vector<32x1xi1> to vector<32x1xi32>
    %114 = arith.sitofp %113 : vector<32x1xi32> to vector<32x1xf32>
    %c4_i32_61 = arith.constant 4 : i32
    %115 = tpu.dynamic_rotate %108 by %c4_i32_61 dim 0 : vector<32x32xf32>, i32 -> vector<32x32xf32>
    %116 = vector.broadcast %114 : vector<32x1xf32> to vector<32x32xf32>
    %117 = arith.mulf %115, %116 : vector<32x32xf32>
    %118 = arith.truncf %117 : vector<32x32xf32> to vector<32x32xbf16>
    %c1_62 = arith.constant 1 : index
    %c0_63 = arith.constant 0 : index
    %c0_64 = arith.constant 0 : index
    %c0_65 = arith.constant 0 : index
    %119 = vector.load %arg4[%c1_62, %c0_63, %c0_64, %c0_65] : memref<2x3x32x32xbf16, #tpu.memory_space<vmem>>, vector<1x1x32x32xbf16>
    %120 = vector.shape_cast %119 : vector<1x1x32x32xbf16> to vector<32x32xbf16>
    %cst_66 = arith.constant dense<0.000000e+00> : vector<32x32xf32>
    %121 = tpu.matmul %118, %120, %cst_66 {dimension_numbers = #tpu.dot_dimension_numbers<[1], [0], [0], [1], [0, 0, 1, 1], [], []>} : vector<32x32xbf16>, vector<32x32xbf16>, vector<32x32xf32> -> vector<32x32xf32>
    %122 = arith.addf %109, %121 : vector<32x32xf32>
    %c1_67 = arith.constant 1 : index
    %c0_68 = arith.constant 0 : index
    %c0_69 = arith.constant 0 : index
    %c0_70 = arith.constant 0 : index
    %123 = vector.load %arg5[%c1_67, %c0_68, %c0_69, %c0_70] : memref<2x3x32x32xbf16, #tpu.memory_space<vmem>>, vector<1x1x32x32xbf16>
    %124 = vector.shape_cast %123 : vector<1x1x32x32xbf16> to vector<32x32xbf16>
    %cst_71 = arith.constant dense<0.000000e+00> : vector<32x32xf32>
    %125 = tpu.matmul %118, %124, %cst_71 {dimension_numbers = #tpu.dot_dimension_numbers<[1], [0], [0], [1], [0, 0, 1, 1], [], []>} : vector<32x32xbf16>, vector<32x32xbf16>, vector<32x32xf32> -> vector<32x32xf32>
    %126 = arith.addf %110, %125 : vector<32x32xf32>
    %c2_i32_72 = arith.constant 2 : i32
    %127 = tpu.dynamic_rotate %108 by %c2_i32_72 dim 0 : vector<32x32xf32>, i32 -> vector<32x32xf32>
    %128 = vector.broadcast %32 : vector<32x1xf32> to vector<32x32xf32>
    %129 = arith.mulf %127, %128 : vector<32x32xf32>
    %130 = arith.truncf %129 : vector<32x32xf32> to vector<32x32xbf16>
    %c1_73 = arith.constant 1 : index
    %c1_74 = arith.constant 1 : index
    %c0_75 = arith.constant 0 : index
    %c0_76 = arith.constant 0 : index
    %131 = vector.load %arg4[%c1_73, %c1_74, %c0_75, %c0_76] : memref<2x3x32x32xbf16, #tpu.memory_space<vmem>>, vector<1x1x32x32xbf16>
    %132 = vector.shape_cast %131 : vector<1x1x32x32xbf16> to vector<32x32xbf16>
    %cst_77 = arith.constant dense<0.000000e+00> : vector<32x32xf32>
    %133 = tpu.matmul %130, %132, %cst_77 {dimension_numbers = #tpu.dot_dimension_numbers<[1], [0], [0], [1], [0, 0, 1, 1], [], []>} : vector<32x32xbf16>, vector<32x32xbf16>, vector<32x32xf32> -> vector<32x32xf32>
    %134 = arith.addf %122, %133 : vector<32x32xf32>
    %c1_78 = arith.constant 1 : index
    %c1_79 = arith.constant 1 : index
    %c0_80 = arith.constant 0 : index
    %c0_81 = arith.constant 0 : index
    %135 = vector.load %arg5[%c1_78, %c1_79, %c0_80, %c0_81] : memref<2x3x32x32xbf16, #tpu.memory_space<vmem>>, vector<1x1x32x32xbf16>
    %136 = vector.shape_cast %135 : vector<1x1x32x32xbf16> to vector<32x32xbf16>
    %cst_82 = arith.constant dense<0.000000e+00> : vector<32x32xf32>
    %137 = tpu.matmul %130, %136, %cst_82 {dimension_numbers = #tpu.dot_dimension_numbers<[1], [0], [0], [1], [0, 0, 1, 1], [], []>} : vector<32x32xbf16>, vector<32x32xbf16>, vector<32x32xf32> -> vector<32x32xf32>
    %138 = arith.addf %126, %137 : vector<32x32xf32>
    %139 = arith.truncf %108 : vector<32x32xf32> to vector<32x32xbf16>
    %c1_83 = arith.constant 1 : index
    %c2_84 = arith.constant 2 : index
    %c0_85 = arith.constant 0 : index
    %c0_86 = arith.constant 0 : index
    %140 = vector.load %arg4[%c1_83, %c2_84, %c0_85, %c0_86] : memref<2x3x32x32xbf16, #tpu.memory_space<vmem>>, vector<1x1x32x32xbf16>
    %141 = vector.shape_cast %140 : vector<1x1x32x32xbf16> to vector<32x32xbf16>
    %cst_87 = arith.constant dense<0.000000e+00> : vector<32x32xf32>
    %142 = tpu.matmul %139, %141, %cst_87 {dimension_numbers = #tpu.dot_dimension_numbers<[1], [0], [0], [1], [0, 0, 1, 1], [], []>} : vector<32x32xbf16>, vector<32x32xbf16>, vector<32x32xf32> -> vector<32x32xf32>
    %143 = arith.addf %134, %142 : vector<32x32xf32>
    %c1_88 = arith.constant 1 : index
    %c2_89 = arith.constant 2 : index
    %c0_90 = arith.constant 0 : index
    %c0_91 = arith.constant 0 : index
    %144 = vector.load %arg5[%c1_88, %c2_89, %c0_90, %c0_91] : memref<2x3x32x32xbf16, #tpu.memory_space<vmem>>, vector<1x1x32x32xbf16>
    %145 = vector.shape_cast %144 : vector<1x1x32x32xbf16> to vector<32x32xbf16>
    %cst_92 = arith.constant dense<0.000000e+00> : vector<32x32xf32>
    %146 = tpu.matmul %139, %145, %cst_92 {dimension_numbers = #tpu.dot_dimension_numbers<[1], [0], [0], [1], [0, 0, 1, 1], [], []>} : vector<32x32xbf16>, vector<32x32xbf16>, vector<32x32xf32> -> vector<32x32xf32>
    %147 = arith.addf %138, %146 : vector<32x32xf32>
    %c1_93 = arith.constant 1 : index
    %c0_94 = arith.constant 0 : index
    %c0_95 = arith.constant 0 : index
    %148 = vector.load %arg6[%c1_93, %c0_94, %c0_95] : memref<2x1x32xf32, #tpu.memory_space<vmem>>, vector<1x1x32xf32>
    %149 = vector.shape_cast %148 : vector<1x1x32xf32> to vector<1x32xf32>
    %150 = vector.broadcast %149 : vector<1x32xf32> to vector<32x32xf32>
    %151 = arith.addf %143, %150 : vector<32x32xf32>
    %c1_96 = arith.constant 1 : index
    %c0_97 = arith.constant 0 : index
    %c0_98 = arith.constant 0 : index
    %152 = vector.load %arg7[%c1_96, %c0_97, %c0_98] : memref<2x1x32xf32, #tpu.memory_space<vmem>>, vector<1x1x32xf32>
    %153 = vector.shape_cast %152 : vector<1x1x32xf32> to vector<1x32xf32>
    %154 = vector.broadcast %153 : vector<1x32xf32> to vector<32x32xf32>
    %155 = arith.addf %147, %154 : vector<32x32xf32>
    %156 = arith.negf %155 : vector<32x32xf32>
    %157 = math.exp %156 : vector<32x32xf32>
    %cst_99 = arith.constant 1.000000e+00 : f32
    %158 = vector.broadcast %cst_99 : f32 to vector<32x32xf32>
    %159 = arith.addf %158, %157 : vector<32x32xf32>
    %160 = arith.divf %158, %159 : vector<32x32xf32>
    %161 = arith.mulf %151, %160 : vector<32x32xf32>
    %cst_100 = arith.constant dense<0.000000e+00> : vector<32xf32>
    %162 = vector.multi_reduction <add>, %161, %cst_100 [1] : vector<32x32xf32> to vector<32xf32>
    %163 = vector.shape_cast %162 : vector<32xf32> to vector<32x1xf32>
    %cst_101 = arith.constant 3.200000e+01 : f32
    %164 = vector.broadcast %cst_101 : f32 to vector<32x1xf32>
    %165 = arith.divf %163, %164 : vector<32x1xf32>
    %166 = vector.broadcast %165 : vector<32x1xf32> to vector<32x32xf32>
    %167 = arith.subf %161, %166 : vector<32x32xf32>
    %168 = arith.mulf %167, %167 : vector<32x32xf32>
    %cst_102 = arith.constant dense<0.000000e+00> : vector<32xf32>
    %169 = vector.multi_reduction <add>, %168, %cst_102 [1] : vector<32x32xf32> to vector<32xf32>
    %170 = vector.shape_cast %169 : vector<32xf32> to vector<32x1xf32>
    %cst_103 = arith.constant 3.200000e+01 : f32
    %171 = vector.broadcast %cst_103 : f32 to vector<32x1xf32>
    %172 = arith.divf %170, %171 : vector<32x1xf32>
    %cst_104 = arith.constant 9.99999974E-6 : f32
    %173 = vector.broadcast %cst_104 : f32 to vector<32x1xf32>
    %174 = arith.addf %172, %173 : vector<32x1xf32>
    %175 = math.rsqrt %174 : vector<32x1xf32>
    %176 = vector.broadcast %175 : vector<32x1xf32> to vector<32x32xf32>
    %177 = arith.mulf %167, %176 : vector<32x32xf32>
    %c1_105 = arith.constant 1 : index
    %c0_106 = arith.constant 0 : index
    %c0_107 = arith.constant 0 : index
    %178 = vector.load %arg8[%c1_105, %c0_106, %c0_107] : memref<2x1x32xf32, #tpu.memory_space<vmem>>, vector<1x1x32xf32>
    %179 = vector.shape_cast %178 : vector<1x1x32xf32> to vector<1x32xf32>
    %180 = vector.broadcast %179 : vector<1x32xf32> to vector<32x32xf32>
    %181 = arith.mulf %177, %180 : vector<32x32xf32>
    %c1_108 = arith.constant 1 : index
    %c0_109 = arith.constant 0 : index
    %c0_110 = arith.constant 0 : index
    %182 = vector.load %arg9[%c1_108, %c0_109, %c0_110] : memref<2x1x32xf32, #tpu.memory_space<vmem>>, vector<1x1x32xf32>
    %183 = vector.shape_cast %182 : vector<1x1x32xf32> to vector<1x32xf32>
    %184 = vector.broadcast %183 : vector<1x32xf32> to vector<32x32xf32>
    %185 = arith.addf %181, %184 : vector<32x32xf32>
    %186 = arith.addf %185, %108 : vector<32x32xf32>
    %187 = arith.truncf %186 : vector<32x32xf32> to vector<32x32xbf16>
    %c0_111 = arith.constant 0 : index
    %c0_112 = arith.constant 0 : index
    %188 = vector.load %arg10[%c0_111, %c0_112] : memref<32x128xbf16, #tpu.memory_space<vmem>>, vector<32x128xbf16>
    %cst_113 = arith.constant dense<0.000000e+00> : vector<32x128xf32>
    %189 = tpu.matmul %187, %188, %cst_113 {dimension_numbers = #tpu.dot_dimension_numbers<[1], [0], [0], [1], [0, 0, 1, 1], [], []>} : vector<32x32xbf16>, vector<32x128xbf16>, vector<32x128xf32> -> vector<32x128xf32>
    %c0_114 = arith.constant 0 : index
    %c0_115 = arith.constant 0 : index
    %190 = vector.load %arg11[%c0_114, %c0_115] : memref<1x128xf32, #tpu.memory_space<vmem>>, vector<1x128xf32>
    %191 = vector.broadcast %190 : vector<1x128xf32> to vector<32x128xf32>
    %192 = arith.addf %189, %191 : vector<32x128xf32>
    %193 = vector.shape_cast %192 : vector<32x128xf32> to vector<2x16x128xf32>
    %c0_116 = arith.constant 0 : index
    %c0_117 = arith.constant 0 : index
    %c0_118 = arith.constant 0 : index
    %194 = vector.load %arg12[%c0_116, %c0_117, %c0_118] : memref<2x16x128xf32, #tpu.memory_space<vmem>>, vector<2x16x128xf32>
    tpu.vector_store %arg12[%c0_116, %c0_117, %c0_118], %193 {strides = array<i32>} : memref<2x16x128xf32, #tpu.memory_space<vmem>>, vector<2x16x128xf32>,
    return
  }
  func.func @transform_0(%arg0: i32) -> (i32, i32) {
    %c0_i32 = arith.constant 0 : i32
    %c0_i32_0 = arith.constant 0 : i32
    %c0_i32_1 = arith.constant 0 : i32
    return %c0_i32, %c0_i32_0 : i32, i32
  }
  func.func @transform_1(%arg0: i32) -> (i32, i32) {
    %c0_i32 = arith.constant 0 : i32
    %c0_i32_0 = arith.constant 0 : i32
    %c0_i32_1 = arith.constant 0 : i32
    return %c0_i32, %c0_i32_0 : i32, i32
  }
  func.func @transform_2(%arg0: i32) -> (i32, i32) {
    %c0_i32 = arith.constant 0 : i32
    %c0_i32_0 = arith.constant 0 : i32
    %c0_i32_1 = arith.constant 0 : i32
    return %c0_i32, %c0_i32_0 : i32, i32
  }
  func.func @transform_3(%arg0: i32) -> (i32, i32, i32, i32) {
    %c0_i32 = arith.constant 0 : i32
    %c0_i32_0 = arith.constant 0 : i32
    %c0_i32_1 = arith.constant 0 : i32
    %c0_i32_2 = arith.constant 0 : i32
    %c0_i32_3 = arith.constant 0 : i32
    return %c0_i32, %c0_i32_0, %c0_i32_1, %c0_i32_2 : i32, i32, i32, i32
  }
  func.func @transform_4(%arg0: i32) -> (i32, i32, i32, i32) {
    %c0_i32 = arith.constant 0 : i32
    %c0_i32_0 = arith.constant 0 : i32
    %c0_i32_1 = arith.constant 0 : i32
    %c0_i32_2 = arith.constant 0 : i32
    %c0_i32_3 = arith.constant 0 : i32
    return %c0_i32, %c0_i32_0, %c0_i32_1, %c0_i32_2 : i32, i32, i32, i32
  }
  func.func @transform_5(%arg0: i32) -> (i32, i32, i32) {
    %c0_i32 = arith.constant 0 : i32
    %c0_i32_0 = arith.constant 0 : i32
    %c0_i32_1 = arith.constant 0 : i32
    %c0_i32_2 = arith.constant 0 : i32
    return %c0_i32, %c0_i32_0, %c0_i32_1 : i32, i32, i32
  }
  func.func @transform_6(%arg0: i32) -> (i32, i32, i32) {
    %c0_i32 = arith.constant 0 : i32
    %c0_i32_0 = arith.constant 0 : i32
    %c0_i32_1 = arith.constant 0 : i32
    %c0_i32_2 = arith.constant 0 : i32
    return %c0_i32, %c0_i32_0, %c0_i32_1 : i32, i32, i32
  }
  func.func @transform_7(%arg0: i32) -> (i32, i32, i32) {
    %c0_i32 = arith.constant 0 : i32
    %c0_i32_0 = arith.constant 0 : i32
    %c0_i32_1 = arith.constant 0 : i32
    %c0_i32_2 = arith.constant 0 : i32
    return %c0_i32, %c0_i32_0, %c0_i32_1 : i32, i32, i32
  }
  func.func @transform_8(%arg0: i32) -> (i32, i32, i32) {
    %c0_i32 = arith.constant 0 : i32
    %c0_i32_0 = arith.constant 0 : i32
    %c0_i32_1 = arith.constant 0 : i32
    %c0_i32_2 = arith.constant 0 : i32
    return %c0_i32, %c0_i32_0, %c0_i32_1 : i32, i32, i32
  }
  func.func @transform_9(%arg0: i32) -> (i32, i32) {
    %c0_i32 = arith.constant 0 : i32
    %c0_i32_0 = arith.constant 0 : i32
    %c0_i32_1 = arith.constant 0 : i32
    return %c0_i32, %c0_i32_0 : i32, i32
  }
  func.func @transform_10(%arg0: i32) -> (i32, i32) {
    %c0_i32 = arith.constant 0 : i32
    %c0_i32_0 = arith.constant 0 : i32
    %c0_i32_1 = arith.constant 0 : i32
    return %c0_i32, %c0_i32_0 : i32, i32
  }
  func.func @transform_11(%arg0: i32) -> (i32, i32, i32) {
    %c0_i32 = arith.constant 0 : i32
    %c0_i32_0 = arith.constant 0 : i32
    %c0_i32_1 = arith.constant 0 : i32
    %c0_i32_2 = arith.constant 0 : i32
    return %c0_i32, %c0_i32_0, %c0_i32_1 : i32, i32, i32
  }
}

</mosaic_0001>

<llo_original>
// kernel: cnn_lm_forward_pallas.1
$region0: #{cnn_lm_forward_pallas.1}
  #allocation0 [shape = 'u32[]', space=smem, size = 0x4, offset = 0x4, fixed_abs, tag = 'smem constant byte address 0x4 - core index']
  #allocation1 [shape = 'u32[144,128]{1,0:T(1,128)}', space=vmem, size = 0x12000, scoped, tag = 'internal scratch']
  %s0 = inlined_call_operand.vmem [shape: s32[32,1], index: 0, kind: input, shape index: {}]
  %s1 = inlined_call_operand.vmem [shape: f32[64,32], index: 1, kind: input, shape index: {}]
  %s2 = inlined_call_operand.vmem [shape: f32[32,32], index: 2, kind: input, shape index: {}]
  %s3 = inlined_call_operand.vmem [shape: bf16[2,3,32,32], index: 3, kind: input, shape index: {}]
  %s4 = inlined_call_operand.hbm [shape: bf16[2,3,32,32], index: 4, kind: input, shape index: {}]
  %s5 = inlined_call_operand.vmem [shape: f32[2,1,32], index: 5, kind: input, shape index: {}]
  %s6 = inlined_call_operand.vmem [shape: f32[2,1,32], index: 6, kind: input, shape index: {}]
  %s7 = inlined_call_operand.hbm [shape: f32[2,1,32], index: 7, kind: input, shape index: {}]
  %s8 = inlined_call_operand.hbm [shape: f32[2,1,32], index: 8, kind: input, shape index: {}]
  %s9 = inlined_call_operand.vmem [shape: bf16[32,128], index: 9, kind: input, shape index: {}]
  %s10 = inlined_call_operand.hbm [shape: f32[1,128], index: 10, kind: input, shape index: {}]
  %s11 = inlined_call_operand.hbm [shape: f32[2,16,128], index: 11, kind: output, shape index: {}]
  %s12 = sld [smem:[#allocation0]]
  $region70: #{cnn_lm_forward_pallas.1} parent=0
    _
  %s14 = ssub.s32 1, %s12
  %s15 = scalar_select 0, %s14, %s12
  $region1: #{cnn_lm_forward_pallas.1} parent=0
    #allocation2 [shape = 'u8[49152]{0}', space=vmem, size = 0xc000, scoped, tag = 'input window, operand 4, single buffered']
    #allocation3 [shape = 's32[1]{0}', space=sflag, size = 0x4, scoped, tag = 'scoped memory for cnn_lm_forward_pallas.1']
    #allocation4 [shape = 's32[1]{0}', space=sflag, size = 0x4, scoped, tag = 'scoped memory for cnn_lm_forward_pallas.1']
    #allocation5 [shape = 'u8[1024]{0}', space=vmem, size = 0x400, scoped, tag = 'input window, operand 7, single buffered']
    #allocation6 [shape = 's32[1]{0}', space=sflag, size = 0x4, scoped, tag = 'scoped memory for cnn_lm_forward_pallas.1']
    #allocation7 [shape = 'u8[1024]{0}', space=vmem, size = 0x400, scoped, tag = 'input window, operand 8, single buffered']
    #allocation8 [shape = 'u8[512]{0}', space=vmem, size = 0x400, scoped, tag = 'input window, operand 10, single buffered']
    #allocation9 [shape = 's32[1]{0}', space=sflag, size = 0x4, scoped, tag = 'scoped memory for cnn_lm_forward_pallas.1']
    #allocation10 [shape = 'u8[16384]{0}', space=vmem, size = 0x4000, scoped, tag = 'output window, operand 0, single buffered']
    %16 = vsyncpa [#allocation3], 0
    %17 = vsyncpa [#allocation6], 0
    %18 = vsyncpa [#allocation9], 0
    %19 = vsyncpa [#allocation4], 0
    // Predicated region
    $region2: #{cnn_lm_forward_pallas.1} parent=1 // pred_check
      _
    $region3: #{cnn_lm_forward_pallas.1} parent=1 // pred_check_branch
      %21 = sbr.rel (0) target = $region5
    $region4: #{cnn_lm_forward_pallas.1} parent=1 // pred_region
      _
    $region5: #{cnn_lm_forward_pallas.1} parent=1 // pred_fallthru
      _
    // Predicated region
    $region6: #{cnn_lm_forward_pallas.1} parent=1 // pred_check
      _
    $region7: #{cnn_lm_forward_pallas.1} parent=1 // pred_check_branch
      %23 = sbr.rel (0) target = $region9
    $region8: #{cnn_lm_forward_pallas.1} parent=1 // pred_region
      _
    $region9: #{cnn_lm_forward_pallas.1} parent=1 // pred_fallthru
      _
    // Predicated region
    $region10: #{cnn_lm_forward_pallas.1} parent=1 // pred_check
      _
    $region11: #{cnn_lm_forward_pallas.1} parent=1 // pred_check_branch
      %25 = sbr.rel (0) target = $region13
    $region12: #{cnn_lm_forward_pallas.1} parent=1 // pred_region
      _
    $region13: #{cnn_lm_forward_pallas.1} parent=1 // pred_fallthru
      _
    // Predicated region
    $region14: #{cnn_lm_forward_pallas.1} parent=1 // pred_check
      _
    $region15: #{cnn_lm_forward_pallas.1} parent=1 // pred_check_branch
      %27 = sbr.rel (0) target = $region17
    $region16: #{cnn_lm_forward_pallas.1} parent=1 // pred_region
      _
    $region17: #{cnn_lm_forward_pallas.1} parent=1 // pred_fallthru
      _
    // Predicated region
    $region18: #{cnn_lm_forward_pallas.1} parent=1 // pred_check
      _
    $region19: #{cnn_lm_forward_pallas.1} parent=1 // pred_check_branch
      %29 = sbr.rel (0) target = $region21
    $region20: #{cnn_lm_forward_pallas.1} parent=1 // pred_region
      %s31 = ssub.s32 1536, 1536
      %32 = vsyncadd [#allocation3], %s31
      %s33 = sshll.u32 [#allocation2], 4
      %s34 = int_to_ptr.vmem [resolvable:$true] %s33
      %39 = dma.hbm_to_vmem [thread:$0]  %s4, 1536, %s34, [#allocation3], 64, 64, 4
    $region21: #{cnn_lm_forward_pallas.1} parent=1 // pred_fallthru
      _
    // Predicated region
    $region22: #{cnn_lm_forward_pallas.1} parent=1 // pred_check
      _
    $region23: #{cnn_lm_forward_pallas.1} parent=1 // pred_check_branch
      %41 = sbr.rel (0) target = $region25
    $region24: #{cnn_lm_forward_pallas.1} parent=1 // pred_region
      _
    $region25: #{cnn_lm_forward_pallas.1} parent=1 // pred_fallthru
      _
    // Predicated region
    $region26: #{cnn_lm_forward_pallas.1} parent=1 // pred_check
      _
    $region27: #{cnn_lm_forward_pallas.1} parent=1 // pred_check_branch
      %43 = sbr.rel (0) target = $region29
    $region28: #{cnn_lm_forward_pallas.1} parent=1 // pred_region
      _
    $region29: #{cnn_lm_forward_pallas.1} parent=1 // pred_fallthru
      _
    // Predicated region
    $region30: #{cnn_lm_forward_pallas.1} parent=1 // pred_check
      _
    $region31: #{cnn_lm_forward_pallas.1} parent=1 // pred_check_branch
      %45 = sbr.rel (0) target = $region33
    $region32: #{cnn_lm_forward_pallas.1} parent=1 // pred_region
      %s47 = ssub.s32 32, 32
      %48 = vsyncadd [#allocation6], %s47
      %s49 = sshll.u32 [#allocation5], 4
      %s50 = int_to_ptr.vmem [resolvable:$true] %s49
      %55 = dma.hbm_to_vmem [thread:$0]  %s7, 32, %s50, [#allocation6], 16, 16, 1
    $region33: #{cnn_lm_forward_pallas.1} parent=1 // pred_fallthru
      _
    // Predicated region
    $region34: #{cnn_lm_forward_pallas.1} parent=1 // pred_check
      _
    $region35: #{cnn_lm_forward_pallas.1} parent=1 // pred_check_branch
      %57 = sbr.rel (0) target = $region37
    $region36: #{cnn_lm_forward_pallas.1} parent=1 // pred_region
      %s59 = ssub.s32 32, 32
      %60 = vsyncadd [#allocation6], %s59
      %s61 = sshll.u32 [#allocation7], 4
      %s62 = int_to_ptr.vmem [resolvable:$true] %s61
      %67 = dma.hbm_to_vmem [thread:$0]  %s8, 32, %s62, [#allocation6], 16, 16, 1
    $region37: #{cnn_lm_forward_pallas.1} parent=1 // pred_fallthru
      _
    // Predicated region
    $region38: #{cnn_lm_forward_pallas.1} parent=1 // pred_check
      _
    $region39: #{cnn_lm_forward_pallas.1} parent=1 // pred_check_branch
      %69 = sbr.rel (0) target = $region41
    $region40: #{cnn_lm_forward_pallas.1} parent=1 // pred_region
      _
    $region41: #{cnn_lm_forward_pallas.1} parent=1 // pred_fallthru
      _
    // Predicated region
    $region42: #{cnn_lm_forward_pallas.1} parent=1 // pred_check
      _
    $region43: #{cnn_lm_forward_pallas.1} parent=1 // pred_check_branch
      %71 = sbr.rel (0) target = $region45
    $region44: #{cnn_lm_forward_pallas.1} parent=1 // pred_region
      %s73 = ssub.s32 16, 16
      %74 = vsyncadd [#allocation9], %s73
      %s76 = sshll.u32 [#allocation8], 4
      %s77 = int_to_ptr.vmem [resolvable:$true] %s76
      %79 = dma.hbm_to_vmem [thread:$0]  %s10, 16, %s77, [#allocation9]
    $region45: #{cnn_lm_forward_pallas.1} parent=1 // pred_fallthru
      _
    // Predicated region
    $region46: #{cnn_lm_forward_pallas.1} parent=1 // pred_check
      _
    $region47: #{cnn_lm_forward_pallas.1} parent=1 // pred_check_branch
      %81 = sbr.rel (0) target = $region49
    $region48: #{cnn_lm_forward_pallas.1} parent=1 // pred_region
      %82 = dma.done [#allocation3], 1536
    $region49: #{cnn_lm_forward_pallas.1} parent=1 // pred_fallthru
      _
    // Predicated region
    $region50: #{cnn_lm_forward_pallas.1} parent=1 // pred_check
      _
    $region51: #{cnn_lm_forward_pallas.1} parent=1 // pred_check_branch
      %84 = sbr.rel (0) target = $region53
    $region52: #{cnn_lm_forward_pallas.1} parent=1 // pred_region
      %85 = dma.done [#allocation6], 32
    $region53: #{cnn_lm_forward_pallas.1} parent=1 // pred_fallthru
      _
    // Predicated region
    $region54: #{cnn_lm_forward_pallas.1} parent=1 // pred_check
      _
    $region55: #{cnn_lm_forward_pallas.1} parent=1 // pred_check_branch
      %87 = sbr.rel (0) target = $region57
    $region56: #{cnn_lm_forward_pallas.1} parent=1 // pred_region
      %88 = dma.done [#allocation6], 32
    $region57: #{cnn_lm_forward_pallas.1} parent=1 // pred_fallthru
      _
    // Predicated region
    $region58: #{cnn_lm_forward_pallas.1} parent=1 // pred_check
      _
    $region59: #{cnn_lm_forward_pallas.1} parent=1 // pred_check_branch
      %90 = sbr.rel (0) target = $region61
    $region60: #{cnn_lm_forward_pallas.1} parent=1 // pred_region
      %91 = dma.done [#allocation9], 16
    $region61: #{cnn_lm_forward_pallas.1} parent=1 // pred_fallthru
      _
    %v93 = vld [vmem:[%s0] sm:$0xff]
    %v94 = vld [vmem:[%s0 + $0x8] sm:$0xff]
    %v95 = vld [vmem:[%s0 + $0x10] sm:$0xff]
    %v96 = vld [vmem:[%s0 + $0x18] sm:$0xff]
    %v97 = vlaneseq
    %v98 = vand.u32 %v97, 127
    %99 = vset.pattern.permute.xlu0 0
    %100 = vperm.xlu0 %99, %v93
    %v101 = vpop.permute.xlu0 %100
    %102 = vset.pattern.permute.xlu0 0
    %103 = vperm.xlu0 %102, %v94
    %v104 = vpop.permute.xlu0 %103
    %105 = vset.pattern.permute.xlu0 0
    %106 = vperm.xlu0 %105, %v95
    %v107 = vpop.permute.xlu0 %106
    %108 = vset.pattern.permute.xlu0 0
    %109 = vperm.xlu0 %108, %v96
    %v110 = vpop.permute.xlu0 %109
    %vm111 = vcmp.eq.s32.totalorder %v98, %v101
    %vm112 = vcmp.eq.s32.totalorder %v98, %v104
    %vm113 = vcmp.eq.s32.totalorder %v98, %v107
    %vm114 = vcmp.eq.s32.totalorder %v98, %v110
    %v115 = vsel %vm111, 1, 0
    %v116 = vsel %vm112, 1, 0
    %v117 = vsel %vm113, 1, 0
    %v118 = vsel %vm114, 1, 0
    %v119 = vcvt.s32.f32 %v115
    %v120 = vcvt.s32.f32 %v116
    %v121 = vcvt.s32.f32 %v117
    %v122 = vcvt.s32.f32 %v118
    %v123 = vld [vmem:[%s1] sm:$0xff]
    %v124 = vld [vmem:[%s1 + $0x8] sm:$0xff]
    %v125 = vld [vmem:[%s1 + $0x10] sm:$0xff]
    %v126 = vld [vmem:[%s1 + $0x18] sm:$0xff]
    %v127 = vld [vmem:[%s1 + $0x20] sm:$0xff]
    %v128 = vld [vmem:[%s1 + $0x28] sm:$0xff]
    %v129 = vld [vmem:[%s1 + $0x30] sm:$0xff]
    %v130 = vld [vmem:[%s1 + $0x38] sm:$0xff]
    %v131 = vld [vmem:[%s2] sm:$0xff]
    %v132 = vld [vmem:[%s2 + $0x8] sm:$0xff]
    %v133 = vld [vmem:[%s2 + $0x10] sm:$0xff]
    %v134 = vld [vmem:[%s2 + $0x18] sm:$0xff]
    %vm135 = vcmask 523264
    %v137 = vsel %vm135, %v119, 0
    %v140 = vsel %vm135, %v120, 0
    %v143 = vsel %vm135, %v121, 0
    %v146 = vsel %vm135, %v122, 0
    %148 = vmatprep.subr.mxu0 0.0
    %149 = vmatpush1.msra.mxu0 0.0
    %150 = vmatprep.subr.mxu0 0.0
    %151 = vmatpush1.msra.mxu0 0.0
    %152 = vmatprep.subr.mxu0 0.0
    %153 = vmatpush1.msra.mxu0 0.0
    %154 = vmatprep.subr.mxu0 0.0
    %155 = vmatpush1.msra.mxu0 0.0
    %156 = vmatprep.subr.mxu0 0.0
    %157 = vmatpush1.msra.mxu0 0.0
    %158 = vmatprep.subr.mxu0 0.0
    %159 = vmatpush1.msra.mxu0 0.0
    %160 = vmatprep.subr.mxu0 0.0
    %161 = vmatpush1.msra.mxu0 0.0
    %162 = vmatprep.subr.mxu0 0.0
    %163 = vmatpush1.msra.mxu0 0.0
    %164 = vmatprep.subr.mxu0 0.0
    %165 = vmatpush1.msra.mxu0 %v130
    %166 = vmatprep.subr.mxu0 0.0
    %167 = vmatpush1.msra.mxu0 %v129
    %168 = vmatprep.subr.mxu0 0.0
    %169 = vmatpush1.msra.mxu0 %v128
    %170 = vmatprep.subr.mxu0 0.0
    %171 = vmatpush1.msra.mxu0 %v127
    %172 = vmatprep.subr.mxu0 0.0
    %173 = vmatpush1.msra.mxu0 %v126
    %174 = vmatprep.subr.mxu0 0.0
    %175 = vmatpush1.msra.mxu0 %v125
    %176 = vmatprep.subr.mxu0 0.0
    %177 = vmatpush1.msra.mxu0 %v124
    %178 = vmatprep.subr.mxu0 0.0
    %179 = vmatpush1.msra.mxu0 %v123
    %180 = vmatprep.subr.mxu0 0.0
    %181 = vmatpush2.msra.mxu0 0.0
    %182 = vmatprep.subr.mxu0 0.0
    %183 = vmatpush2.msra.mxu0 0.0
    %184 = vmatprep.subr.mxu0 0.0
    %185 = vmatpush2.msra.mxu0 0.0
    %186 = vmatprep.subr.mxu0 0.0
    %187 = vmatpush2.msra.mxu0 0.0
    %188 = vmatprep.subr.mxu0 0.0
    %189 = vmatpush2.msra.mxu0 0.0
    %190 = vmatprep.subr.mxu0 0.0
    %191 = vmatpush2.msra.mxu0 0.0
    %192 = vmatprep.subr.mxu0 0.0
    %193 = vmatpush2.msra.mxu0 0.0
    %194 = vmatprep.subr.mxu0 0.0
    %195 = vmatpush2.msra.mxu0 0.0
    %196 = vmatprep.subr.mxu0 0.0
    %197 = vmatpush2.msra.mxu0 0.0
    %198 = vmatprep.subr.mxu0 0.0
    %199 = vmatpush2.msra.mxu0 0.0
    %200 = vmatprep.subr.mxu0 0.0
    %201 = vmatpush2.msra.mxu0 0.0
    %202 = vmatprep.subr.mxu0 0.0
    %203 = vmatpush2.msra.mxu0 0.0
    %204 = vmatprep.subr.mxu0 0.0
    %205 = vmatpush2.msra.mxu0 0.0
    %206 = vmatprep.subr.mxu0 0.0
    %207 = vmatpush2.msra.mxu0 0.0
    %208 = vmatprep.subr.mxu0 0.0
    %209 = vmatpush2.msra.mxu0 0.0
    %210 = vmatprep.subr.mxu0 0.0
    %211 = vmatpush2.msra.mxu0 0.0
    %212 = vmatprep.mubr.f32.mxu0 0.0
    %213 = vmatmul.mubr.f32.gmra.mxu0 %v137
    %v214 = vpop.f32.mrf.mxu0
    %v215 = vadd.f32 %v131, %v214
    %v216 = vpop.f32.mrf.mxu0
    %217 = vmatprep.mubr.f32.mxu0 0.0
    %218 = vmatmul.mubr.f32.gmra.mxu0 %v140
    %v219 = vpop.f32.mrf.mxu0
    %v220 = vadd.f32 %v132, %v219
    %v221 = vpop.f32.mrf.mxu0
    %222 = vmatprep.mubr.f32.mxu0 0.0
    %223 = vmatmul.mubr.f32.gmra.mxu0 %v143
    %v224 = vpop.f32.mrf.mxu0
    %v225 = vadd.f32 %v133, %v224
    %v226 = vpop.f32.mrf.mxu0
    %227 = vmatprep.mubr.f32.mxu0 0.0
    %228 = vmatmul.mubr.f32.gmra.mxu0 %v146
    %v229 = vpop.f32.mrf.mxu0
    %v230 = vadd.f32 %v134, %v229
    %v231 = vpop.f32.mrf.mxu0
    %232 = vdwg.mxu0
    %v233 = vlaneseq
    %v234 = vshrl.u32 %v233, 7
    %v235 = vadd.s32 %v234, 8
    %v236 = vadd.s32 %v234, 16
    %v237 = vadd.s32 %v234, 24
    %vm238 = vcmp.lt.s32.totalorder %v234, 0
    %v239 = vsub.s32 0, %v234
    %v240 = vsel %vm238, %v239, %v234
    %v241 = vshrl.u32 %v240, 4
    %v242 = vand.u32 %v240, 15
    %v243 = vsub.s32 0, %v242
    %v244 = vsel %vm238, %v243, %v242
    %vm245 = vcmp.lt.s32.totalorder %v235, 0
    %v246 = vsub.s32 0, %v235
    %v247 = vsel %vm245, %v246, %v235
    %v248 = vshrl.u32 %v247, 4
    %v249 = vand.u32 %v247, 15
    %v250 = vsub.s32 0, %v249
    %v251 = vsel %vm245, %v250, %v249
    %vm252 = vcmp.lt.s32.totalorder %v236, 0
    %v253 = vsub.s32 0, %v236
    %v254 = vsel %vm252, %v253, %v236
    %v255 = vshrl.u32 %v254, 4
    %v256 = vand.u32 %v254, 15
    %v257 = vsub.s32 0, %v256
    %v258 = vsel %vm252, %v257, %v256
    %vm259 = vcmp.lt.s32.totalorder %v237, 0
    %v260 = vsub.s32 0, %v237
    %v261 = vsel %vm259, %v260, %v237
    %v262 = vshrl.u32 %v261, 4
    %v263 = vand.u32 %v261, 15
    %v264 = vsub.s32 0, %v263
    %v265 = vsel %vm259, %v264, %v263
    %vm266 = vcmp.ne.s32.totalorder %v244, 0
    %vm267 = vcmp.ne.s32.totalorder %v251, 0
    %vm268 = vcmp.ne.s32.totalorder %v258, 0
    %vm269 = vcmp.ne.s32.totalorder %v265, 0
    %vm270 = vcmp.lt.s32.totalorder %v244, 0
    %vm271 = vcmp.lt.s32.totalorder %v251, 0
    %vm272 = vcmp.lt.s32.totalorder %v258, 0
    %vm273 = vcmp.lt.s32.totalorder %v265, 0
    %vm274 = vmand %vm270, %vm266
    %vm275 = vmand %vm271, %vm267
    %vm276 = vmand %vm272, %vm268
    %vm277 = vmand %vm273, %vm269
    %v278 = vadd.s32 %v244, 16
    %v279 = vadd.s32 %v251, 16
    %v280 = vadd.s32 %v258, 16
    %v281 = vadd.s32 %v265, 16
    %v282 = vsel %vm274, %v278, %v244
    %v283 = vsel %vm275, %v279, %v251
    %v284 = vsel %vm276, %v280, %v258
    %v285 = vsel %vm277, %v281, %v265
    %vm286 = vcmp.ge.s32.totalorder %v282, 2
    %vm287 = vcmp.ge.s32.totalorder %v283, 2
    %vm288 = vcmp.ge.s32.totalorder %v284, 2
    %vm289 = vcmp.ge.s32.totalorder %v285, 2
    %v290 = vsel %vm286, 1, 0
    %v291 = vsel %vm287, 1, 0
    %v292 = vsel %vm288, 1, 0
    %v293 = vsel %vm289, 1, 0
    %v294 = vcvt.s32.f32 %v290
    %v295 = vcvt.s32.f32 %v291
    %v296 = vcvt.s32.f32 %v292
    %v297 = vcvt.s32.f32 %v293
    %v298 = vrot.slane %v215, 6
    %v299 = vrot.slane %v220, 6
    %v300 = vrot.slane %v225, 6
    %v301 = vrot.slane %v230, 6
    %vm302 = vcmp.lt.s32.totalorder %v234, 2
    %v303 = vsel %vm302, %v300, %v301
    %v304 = vsel %vm302, %v299, %v300
    %v305 = vsel %vm302, %v298, %v299
    %v306 = vsel %vm302, %v301, %v298
    %v307 = vmul.f32 %v306, %v294
    %v308 = vmul.f32 %v305, %v295
    %v309 = vmul.f32 %v304, %v296
    %v310 = vmul.f32 %v303, %v297
    %v311 = vpack.c.bf16 %v308, %v307
    %v312 = vpack.c.bf16 %v310, %v309
    %v313 = vld [vmem:[%s3] sm:$0xf]
    %v314 = vld [vmem:[%s3 + $0x4] sm:$0xf]
    %v315 = vld [vmem:[%s3 + $0x8] sm:$0xf]
    %v316 = vld [vmem:[%s3 + $0xc] sm:$0xf]
    %v317 = vld [vmem:[#allocation2] sm:$0xf]
    %v318 = vld [vmem:[#allocation2 + $0x4] sm:$0xf]
    %v319 = vld [vmem:[#allocation2 + $0x8] sm:$0xf]
    %v320 = vld [vmem:[#allocation2 + $0xc] sm:$0xf]
    %vm321 = vcmp.ge.s32.totalorder %v282, 1
    %vm322 = vcmp.ge.s32.totalorder %v283, 1
    %vm323 = vcmp.ge.s32.totalorder %v284, 1
    %vm324 = vcmp.ge.s32.totalorder %v285, 1
    %v325 = vsel %vm321, 1, 0
    %v326 = vsel %vm322, 1, 0
    %v327 = vsel %vm323, 1, 0
    %v328 = vsel %vm324, 1, 0
    %v329 = vcvt.s32.f32 %v325
    %v330 = vcvt.s32.f32 %v326
    %v331 = vcvt.s32.f32 %v327
    %v332 = vcvt.s32.f32 %v328
    %v333 = vrot.slane %v215, 7
    %v334 = vrot.slane %v220, 7
    %v335 = vrot.slane %v225, 7
    %v336 = vrot.slane %v230, 7
    %vm337 = vcmp.lt.s32.totalorder %v234, 1
    %v338 = vsel %vm337, %v335, %v336
    %v339 = vsel %vm337, %v334, %v335
    %v340 = vsel %vm337, %v333, %v334
    %v341 = vsel %vm337, %v336, %v333
    %v342 = vmul.f32 %v341, %v329
    %v343 = vmul.f32 %v340, %v330
    %v344 = vmul.f32 %v339, %v331
    %v345 = vmul.f32 %v338, %v332
    %v346 = vpack.c.bf16 %v343, %v342
    %v347 = vpack.c.bf16 %v345, %v344
    %s348 = scalar_lea.vmem %s3, 16
    %v349 = vld [vmem:[%s348] sm:$0xf]
    %v350 = vld [vmem:[%s348 + $0x4] sm:$0xf]
    %v351 = vld [vmem:[%s348 + $0x8] sm:$0xf]
    %v352 = vld [vmem:[%s348 + $0xc] sm:$0xf]
    %v357 = vunpack.c.l.b16 %v349
    %v358 = vunpack.c.l.b16 %v350
    %v359 = vunpack.c.l.b16 %v351
    %v360 = vunpack.c.l.b16 %v352
    %v361 = vpack.c.b16 %v358, %v357
    %v362 = vpack.c.b16 %v360, %v359
    %vm365 = vcmask 261120
    %v367 = vsel %vm365, %v346, 0
    %v370 = vsel %vm365, %v347, 0
    %372 = vmatprep.subr.bf16.mxu0 0
    %373 = vmatpush1.bf16.msra.mxu0 0
    %374 = vmatprep.subr.bf16.mxu0 0
    %375 = vmatpush1.bf16.msra.mxu0 0
    %376 = vmatprep.subr.bf16.mxu0 0
    %377 = vmatpush1.bf16.msra.mxu0 0
    %378 = vmatprep.subr.bf16.mxu0 0
    %379 = vmatpush1.bf16.msra.mxu0 0
    %380 = vmatprep.subr.bf16.mxu0 0
    %381 = vmatpush1.bf16.msra.mxu0 0
    %382 = vmatprep.subr.bf16.mxu0 0
    %383 = vmatpush1.bf16.msra.mxu0 0
    %384 = vmatprep.subr.bf16.mxu0 0
    %385 = vmatpush1.bf16.msra.mxu0 %v362
    %386 = vmatprep.subr.bf16.mxu0 0
    %387 = vmatpush1.bf16.msra.mxu0 %v361
    %388 = vmatprep.subr.bf16.mxu0 0
    %389 = vmatpush2.bf16.msra.mxu0 0
    %390 = vmatprep.subr.bf16.mxu0 0
    %391 = vmatpush2.bf16.msra.mxu0 0
    %392 = vmatprep.subr.bf16.mxu0 0
    %393 = vmatpush2.bf16.msra.mxu0 0
    %394 = vmatprep.subr.bf16.mxu0 0
    %395 = vmatpush2.bf16.msra.mxu0 0
    %396 = vmatprep.subr.bf16.mxu0 0
    %397 = vmatpush2.bf16.msra.mxu0 0
    %398 = vmatprep.subr.bf16.mxu0 0
    %399 = vmatpush2.bf16.msra.mxu0 0
    %400 = vmatprep.subr.bf16.mxu0 0
    %401 = vmatpush2.bf16.msra.mxu0 0
    %402 = vmatprep.subr.bf16.mxu0 0
    %403 = vmatpush2.bf16.msra.mxu0 0
    %404 = vmatprep.mubr.bf16.mxu0 0
    %405 = vmatmul.mubr.bf16.gmra.mxu0 %v367
    %v406 = vpop.f32.mrf.mxu0
    %v407 = vadd.f32 0.0, %v406
    %v408 = vpop.f32.mrf.mxu0
    %v409 = vpop.f32.mrf.mxu0
    %v410 = vadd.f32 0.0, %v409
    %v411 = vpop.f32.mrf.mxu0
    %412 = vmatprep.mubr.bf16.mxu0 0
    %413 = vmatmul.mubr.bf16.gmra.mxu0 %v370
    %v414 = vpop.f32.mrf.mxu0
    %v415 = vadd.f32 0.0, %v414
    %v416 = vpop.f32.mrf.mxu0
    %v417 = vpop.f32.mrf.mxu0
    %v418 = vadd.f32 0.0, %v417
    %v419 = vpop.f32.mrf.mxu0
    %420 = vdwg.mxu0
    %v425 = vunpack.c.l.b16 %v313
    %v426 = vunpack.c.l.b16 %v314
    %v427 = vunpack.c.l.b16 %v315
    %v428 = vunpack.c.l.b16 %v316
    %v429 = vpack.c.b16 %v426, %v425
    %v430 = vpack.c.b16 %v428, %v427
    %v434 = vsel %vm365, %v311, 0
    %v437 = vsel %vm365, %v312, 0
    %439 = vmatprep.subr.bf16.mxu0 0
    %440 = vmatpush1.bf16.msra.mxu0 0
    %441 = vmatprep.subr.bf16.mxu0 0
    %442 = vmatpush1.bf16.msra.mxu0 0
    %443 = vmatprep.subr.bf16.mxu0 0
    %444 = vmatpush1.bf16.msra.mxu0 0
    %445 = vmatprep.subr.bf16.mxu0 0
    %446 = vmatpush1.bf16.msra.mxu0 0
    %447 = vmatprep.subr.bf16.mxu0 0
    %448 = vmatpush1.bf16.msra.mxu0 0
    %449 = vmatprep.subr.bf16.mxu0 0
    %450 = vmatpush1.bf16.msra.mxu0 0
    %451 = vmatprep.subr.bf16.mxu0 0
    %452 = vmatpush1.bf16.msra.mxu0 %v430
    %453 = vmatprep.subr.bf16.mxu0 0
    %454 = vmatpush1.bf16.msra.mxu0 %v429
    %455 = vmatprep.subr.bf16.mxu0 0
    %456 = vmatpush2.bf16.msra.mxu0 0
    %457 = vmatprep.subr.bf16.mxu0 0
    %458 = vmatpush2.bf16.msra.mxu0 0
    %459 = vmatprep.subr.bf16.mxu0 0
    %460 = vmatpush2.bf16.msra.mxu0 0
    %461 = vmatprep.subr.bf16.mxu0 0
    %462 = vmatpush2.bf16.msra.mxu0 0
    %463 = vmatprep.subr.bf16.mxu0 0
    %464 = vmatpush2.bf16.msra.mxu0 0
    %465 = vmatprep.subr.bf16.mxu0 0
    %466 = vmatpush2.bf16.msra.mxu0 0
    %467 = vmatprep.subr.bf16.mxu0 0
    %468 = vmatpush2.bf16.msra.mxu0 0
    %469 = vmatprep.subr.bf16.mxu0 0
    %470 = vmatpush2.bf16.msra.mxu0 0
    %471 = vmatprep.mubr.bf16.mxu0 0
    %472 = vmatmul.mubr.bf16.gmra.mxu0 %v434
    %v473 = vpop.f32.mrf.mxu0
    %v474 = vadd.f32 %v407, %v473
    %v475 = vpop.f32.mrf.mxu0
    %v476 = vpop.f32.mrf.mxu0
    %v477 = vadd.f32 %v410, %v476
    %v478 = vpop.f32.mrf.mxu0
    %479 = vmatprep.mubr.bf16.mxu0 0
    %480 = vmatmul.mubr.bf16.gmra.mxu0 %v437
    %v481 = vpop.f32.mrf.mxu0
    %v482 = vadd.f32 %v415, %v481
    %v483 = vpop.f32.mrf.mxu0
    %v484 = vpop.f32.mrf.mxu0
    %v485 = vadd.f32 %v418, %v484
    %v486 = vpop.f32.mrf.mxu0
    %487 = vdwg.mxu0
    %s488 = scalar_lea.vmem [#allocation2], 16
    %v489 = vld [vmem:[%s488] sm:$0xf]
    %v490 = vld [vmem:[%s488 + $0x4] sm:$0xf]
    %v491 = vld [vmem:[%s488 + $0x8] sm:$0xf]
    %v492 = vld [vmem:[%s488 + $0xc] sm:$0xf]
    %v497 = vunpack.c.l.b16 %v489
    %v498 = vunpack.c.l.b16 %v490
    %v499 = vunpack.c.l.b16 %v491
    %v500 = vunpack.c.l.b16 %v492
    %v501 = vpack.c.b16 %v498, %v497
    %v502 = vpack.c.b16 %v500, %v499
    %505 = vmatprep.subr.bf16.mxu0 0
    %506 = vmatpush1.bf16.msra.mxu0 0
    %507 = vmatprep.subr.bf16.mxu0 0
    %508 = vmatpush1.bf16.msra.mxu0 0
    %509 = vmatprep.subr.bf16.mxu0 0
    %510 = vmatpush1.bf16.msra.mxu0 0
    %511 = vmatprep.subr.bf16.mxu0 0
    %512 = vmatpush1.bf16.msra.mxu0 0
    %513 = vmatprep.subr.bf16.mxu0 0
    %514 = vmatpush1.bf16.msra.mxu0 0
    %515 = vmatprep.subr.bf16.mxu0 0
    %516 = vmatpush1.bf16.msra.mxu0 0
    %517 = vmatprep.subr.bf16.mxu0 0
    %518 = vmatpush1.bf16.msra.mxu0 %v502
    %519 = vmatprep.subr.bf16.mxu0 0
    %520 = vmatpush1.bf16.msra.mxu0 %v501
    %521 = vmatprep.subr.bf16.mxu0 0
    %522 = vmatpush2.bf16.msra.mxu0 0
    %523 = vmatprep.subr.bf16.mxu0 0
    %524 = vmatpush2.bf16.msra.mxu0 0
    %525 = vmatprep.subr.bf16.mxu0 0
    %526 = vmatpush2.bf16.msra.mxu0 0
    %527 = vmatprep.subr.bf16.mxu0 0
    %528 = vmatpush2.bf16.msra.mxu0 0
    %529 = vmatprep.subr.bf16.mxu0 0
    %530 = vmatpush2.bf16.msra.mxu0 0
    %531 = vmatprep.subr.bf16.mxu0 0
    %532 = vmatpush2.bf16.msra.mxu0 0
    %533 = vmatprep.subr.bf16.mxu0 0
    %534 = vmatpush2.bf16.msra.mxu0 0
    %535 = vmatprep.subr.bf16.mxu0 0
    %536 = vmatpush2.bf16.msra.mxu0 0
    %537 = vmatprep.mubr.bf16.mxu0 0
    %538 = vmatmul.mubr.bf16.gmra.mxu0 %v367
    %v539 = vpop.f32.mrf.mxu0
    %v540 = vadd.f32 0.0, %v539
    %v541 = vpop.f32.mrf.mxu0
    %v542 = vpop.f32.mrf.mxu0
    %v543 = vadd.f32 0.0, %v542
    %v544 = vpop.f32.mrf.mxu0
    %545 = vmatprep.mubr.bf16.mxu0 0
    %546 = vmatmul.mubr.bf16.gmra.mxu0 %v370
    %v547 = vpop.f32.mrf.mxu0
    %v548 = vadd.f32 0.0, %v547
    %v549 = vpop.f32.mrf.mxu0
    %v550 = vpop.f32.mrf.mxu0
    %v551 = vadd.f32 0.0, %v550
    %v552 = vpop.f32.mrf.mxu0
    %553 = vdwg.mxu0
    %v558 = vunpack.c.l.b16 %v317
    %v559 = vunpack.c.l.b16 %v318
    %v560 = vunpack.c.l.b16 %v319
    %v561 = vunpack.c.l.b16 %v320
    %v562 = vpack.c.b16 %v559, %v558
    %v563 = vpack.c.b16 %v561, %v560
    %566 = vmatprep.subr.bf16.mxu0 0
    %567 = vmatpush1.bf16.msra.mxu0 0
    %568 = vmatprep.subr.bf16.mxu0 0
    %569 = vmatpush1.bf16.msra.mxu0 0
    %570 = vmatprep.subr.bf16.mxu0 0
    %571 = vmatpush1.bf16.msra.mxu0 0
    %572 = vmatprep.subr.bf16.mxu0 0
    %573 = vmatpush1.bf16.msra.mxu0 0
    %574 = vmatprep.subr.bf16.mxu0 0
    %575 = vmatpush1.bf16.msra.mxu0 0
    %576 = vmatprep.subr.bf16.mxu0 0
    %577 = vmatpush1.bf16.msra.mxu0 0
    %578 = vmatprep.subr.bf16.mxu0 0
    %579 = vmatpush1.bf16.msra.mxu0 %v563
    %580 = vmatprep.subr.bf16.mxu0 0
    %581 = vmatpush1.bf16.msra.mxu0 %v562
    %582 = vmatprep.subr.bf16.mxu0 0
    %583 = vmatpush2.bf16.msra.mxu0 0
    %584 = vmatprep.subr.bf16.mxu0 0
    %585 = vmatpush2.bf16.msra.mxu0 0
    %586 = vmatprep.subr.bf16.mxu0 0
    %587 = vmatpush2.bf16.msra.mxu0 0
    %588 = vmatprep.subr.bf16.mxu0 0
    %589 = vmatpush2.bf16.msra.mxu0 0
    %590 = vmatprep.subr.bf16.mxu0 0
    %591 = vmatpush2.bf16.msra.mxu0 0
    %592 = vmatprep.subr.bf16.mxu0 0
    %593 = vmatpush2.bf16.msra.mxu0 0
    %594 = vmatprep.subr.bf16.mxu0 0
    %595 = vmatpush2.bf16.msra.mxu0 0
    %596 = vmatprep.subr.bf16.mxu0 0
    %597 = vmatpush2.bf16.msra.mxu0 0
    %598 = vmatprep.mubr.bf16.mxu0 0
    %599 = vmatmul.mubr.bf16.gmra.mxu0 %v434
    %v600 = vpop.f32.mrf.mxu0
    %v601 = vadd.f32 %v540, %v600
    %v602 = vpop.f32.mrf.mxu0
    %v603 = vpop.f32.mrf.mxu0
    %v604 = vadd.f32 %v543, %v603
    %v605 = vpop.f32.mrf.mxu0
    %606 = vmatprep.mubr.bf16.mxu0 0
    %607 = vmatmul.mubr.bf16.gmra.mxu0 %v437
    %v608 = vpop.f32.mrf.mxu0
    %v609 = vadd.f32 %v548, %v608
    %v610 = vpop.f32.mrf.mxu0
    %v611 = vpop.f32.mrf.mxu0
    %v612 = vadd.f32 %v551, %v611
    %v613 = vpop.f32.mrf.mxu0
    %614 = vdwg.mxu0
    %v615 = vpack.c.bf16 %v220, %v215
    %v616 = vpack.c.bf16 %v230, %v225
    %s617 = scalar_lea.vmem %s3, 32
    %v618 = vld [vmem:[%s617] sm:$0xf]
    %v619 = vld [vmem:[%s617 + $0x4] sm:$0xf]
    %v620 = vld [vmem:[%s617 + $0x8] sm:$0xf]
    %v621 = vld [vmem:[%s617 + $0xc] sm:$0xf]
    %v626 = vunpack.c.l.b16 %v618
    %v627 = vunpack.c.l.b16 %v619
    %v628 = vunpack.c.l.b16 %v620
    %v629 = vunpack.c.l.b16 %v621
    %v630 = vpack.c.b16 %v627, %v626
    %v631 = vpack.c.b16 %v629, %v628
    %v635 = vsel %vm365, %v615, 0
    %v638 = vsel %vm365, %v616, 0
    %640 = vmatprep.subr.bf16.mxu0 0
    %641 = vmatpush1.bf16.msra.mxu0 0
    %642 = vmatprep.subr.bf16.mxu0 0
    %643 = vmatpush1.bf16.msra.mxu0 0
    %644 = vmatprep.subr.bf16.mxu0 0
    %645 = vmatpush1.bf16.msra.mxu0 0
    %646 = vmatprep.subr.bf16.mxu0 0
    %647 = vmatpush1.bf16.msra.mxu0 0
    %648 = vmatprep.subr.bf16.mxu0 0
    %649 = vmatpush1.bf16.msra.mxu0 0
    %650 = vmatprep.subr.bf16.mxu0 0
    %651 = vmatpush1.bf16.msra.mxu0 0
    %652 = vmatprep.subr.bf16.mxu0 0
    %653 = vmatpush1.bf16.msra.mxu0 %v631
    %654 = vmatprep.subr.bf16.mxu0 0
    %655 = vmatpush1.bf16.msra.mxu0 %v630
    %656 = vmatprep.subr.bf16.mxu0 0
    %657 = vmatpush2.bf16.msra.mxu0 0
    %658 = vmatprep.subr.bf16.mxu0 0
    %659 = vmatpush2.bf16.msra.mxu0 0
    %660 = vmatprep.subr.bf16.mxu0 0
    %661 = vmatpush2.bf16.msra.mxu0 0
    %662 = vmatprep.subr.bf16.mxu0 0
    %663 = vmatpush2.bf16.msra.mxu0 0
    %664 = vmatprep.subr.bf16.mxu0 0
    %665 = vmatpush2.bf16.msra.mxu0 0
    %666 = vmatprep.subr.bf16.mxu0 0
    %667 = vmatpush2.bf16.msra.mxu0 0
    %668 = vmatprep.subr.bf16.mxu0 0
    %669 = vmatpush2.bf16.msra.mxu0 0
    %670 = vmatprep.subr.bf16.mxu0 0
    %671 = vmatpush2.bf16.msra.mxu0 0
    %672 = vmatprep.mubr.bf16.mxu0 0
    %673 = vmatmul.mubr.bf16.gmra.mxu0 %v635
    %v674 = vpop.f32.mrf.mxu0
    %v675 = vadd.f32 0.0, %v674
    %v676 = vpop.f32.mrf.mxu0
    %v677 = vpop.f32.mrf.mxu0
    %v678 = vadd.f32 0.0, %v677
    %v679 = vpop.f32.mrf.mxu0
    %680 = vmatprep.mubr.bf16.mxu0 0
    %681 = vmatmul.mubr.bf16.gmra.mxu0 %v638
    %v682 = vpop.f32.mrf.mxu0
    %v683 = vadd.f32 0.0, %v682
    %v684 = vpop.f32.mrf.mxu0
    %v685 = vpop.f32.mrf.mxu0
    %v686 = vadd.f32 0.0, %v685
    %v687 = vpop.f32.mrf.mxu0
    %688 = vdwg.mxu0
    %v689 = vadd.f32 %v474, %v675
    %v690 = vadd.f32 %v477, %v678
    %v691 = vadd.f32 %v482, %v683
    %v692 = vadd.f32 %v485, %v686
    %s693 = scalar_lea.vmem [#allocation2], 32
    %v694 = vld [vmem:[%s693] sm:$0xf]
    %v695 = vld [vmem:[%s693 + $0x4] sm:$0xf]
    %v696 = vld [vmem:[%s693 + $0x8] sm:$0xf]
    %v697 = vld [vmem:[%s693 + $0xc] sm:$0xf]
    %v702 = vunpack.c.l.b16 %v694
    %v703 = vunpack.c.l.b16 %v695
    %v704 = vunpack.c.l.b16 %v696
    %v705 = vunpack.c.l.b16 %v697
    %v706 = vpack.c.b16 %v703, %v702
    %v707 = vpack.c.b16 %v705, %v704
    %710 = vmatprep.subr.bf16.mxu0 0
    %711 = vmatpush1.bf16.msra.mxu0 0
    %712 = vmatprep.subr.bf16.mxu0 0
    %713 = vmatpush1.bf16.msra.mxu0 0
    %714 = vmatprep.subr.bf16.mxu0 0
    %715 = vmatpush1.bf16.msra.mxu0 0
    %716 = vmatprep.subr.bf16.mxu0 0
    %717 = vmatpush1.bf16.msra.mxu0 0
    %718 = vmatprep.subr.bf16.mxu0 0
    %719 = vmatpush1.bf16.msra.mxu0 0
    %720 = vmatprep.subr.bf16.mxu0 0
    %721 = vmatpush1.bf16.msra.mxu0 0
    %722 = vmatprep.subr.bf16.mxu0 0
    %723 = vmatpush1.bf16.msra.mxu0 %v707
    %724 = vmatprep.subr.bf16.mxu0 0
    %725 = vmatpush1.bf16.msra.mxu0 %v706
    %726 = vmatprep.subr.bf16.mxu0 0
    %727 = vmatpush2.bf16.msra.mxu0 0
    %728 = vmatprep.subr.bf16.mxu0 0
    %729 = vmatpush2.bf16.msra.mxu0 0
    %730 = vmatprep.subr.bf16.mxu0 0
    %731 = vmatpush2.bf16.msra.mxu0 0
    %732 = vmatprep.subr.bf16.mxu0 0
    %733 = vmatpush2.bf16.msra.mxu0 0
    %734 = vmatprep.subr.bf16.mxu0 0
    %735 = vmatpush2.bf16.msra.mxu0 0
    %736 = vmatprep.subr.bf16.mxu0 0
    %737 = vmatpush2.bf16.msra.mxu0 0
    %738 = vmatprep.subr.bf16.mxu0 0
    %739 = vmatpush2.bf16.msra.mxu0 0
    %740 = vmatprep.subr.bf16.mxu0 0
    %741 = vmatpush2.bf16.msra.mxu0 0
    %742 = vmatprep.mubr.bf16.mxu0 0
    %743 = vmatmul.mubr.bf16.gmra.mxu0 %v635
    %v744 = vpop.f32.mrf.mxu0
    %v745 = vadd.f32 0.0, %v744
    %v746 = vpop.f32.mrf.mxu0
    %v747 = vpop.f32.mrf.mxu0
    %v748 = vadd.f32 0.0, %v747
    %v749 = vpop.f32.mrf.mxu0
    %750 = vmatprep.mubr.bf16.mxu0 0
    %751 = vmatmul.mubr.bf16.gmra.mxu0 %v638
    %v752 = vpop.f32.mrf.mxu0
    %v753 = vadd.f32 0.0, %v752
    %v754 = vpop.f32.mrf.mxu0
    %v755 = vpop.f32.mrf.mxu0
    %v756 = vadd.f32 0.0, %v755
    %v757 = vpop.f32.mrf.mxu0
    %758 = vdwg.mxu0
    %v759 = vadd.f32 %v601, %v745
    %v760 = vadd.f32 %v604, %v748
    %v761 = vadd.f32 %v609, %v753
    %v762 = vadd.f32 %v612, %v756
    %v763 = vld [vmem:[%s5] sm:$0x1]
    %v765 = vlaneseq
    %v766 = vshrl.u32 %v765, 7
    %v767 = vsub.s32 0, %v766
    %v768 = vrot.slane %v763, %v767
    %v770 = vadd.f32 %v689, %v768
    %v771 = vadd.f32 %v690, %v768
    %v772 = vadd.f32 %v691, %v768
    %v773 = vadd.f32 %v692, %v768
    %v774 = vld [vmem:[%s6] sm:$0x1]
    %v776 = vlaneseq
    %v777 = vshrl.u32 %v776, 7
    %v778 = vsub.s32 0, %v777
    %v779 = vrot.slane %v774, %v778
    %v781 = vadd.f32 %v759, %v779
    %v782 = vadd.f32 %v760, %v779
    %v783 = vadd.f32 %v761, %v779
    %v784 = vadd.f32 %v762, %v779
    %v785 = vxor.u32 %v781, 2147483648
    %v786 = vxor.u32 %v782, 2147483648
    %v787 = vxor.u32 %v783, 2147483648
    %v788 = vxor.u32 %v784, 2147483648
    %v789 = vmul.f32 %v785, 1.442695
    %v790 = vpow.pop %v789
    %v791 = vmul.f32 %v786, 1.442695
    %v792 = vpow.pop %v791
    %v793 = vmul.f32 %v787, 1.442695
    %v794 = vpow.pop %v793
    %v795 = vmul.f32 %v788, 1.442695
    %v796 = vpow.pop %v795
    %v797 = vadd.f32 %v790, 1.0
    %v798 = vadd.f32 %v792, 1.0
    %v799 = vadd.f32 %v794, 1.0
    %v800 = vadd.f32 %v796, 1.0
    %v801 = vrcp.pop %v797
    %v802 = vmul.f32 1.0, %v801
    %v803 = vrcp.pop %v798
    %v804 = vmul.f32 1.0, %v803
    %v805 = vrcp.pop %v799
    %v806 = vmul.f32 1.0, %v805
    %v807 = vrcp.pop %v800
    %v808 = vmul.f32 1.0, %v807
    %v809 = vmul.f32 %v770, %v802
    %v810 = vmul.f32 %v771, %v804
    %v811 = vmul.f32 %v772, %v806
    %v812 = vmul.f32 %v773, %v808
    %v813 = vsel %vm365, %v809, 0.0
    %814 = vadd.xlane.f32.xlu0 %v813
    %v815 = vpop.xlane.xlu0 %814
    %v816 = vsel %vm365, %v810, 0.0
    %817 = vadd.xlane.f32.xlu0 %v816
    %v818 = vpop.xlane.xlu0 %817
    %v819 = vsel %vm365, %v811, 0.0
    %820 = vadd.xlane.f32.xlu0 %v819
    %v821 = vpop.xlane.xlu0 %820
    %v822 = vsel %vm365, %v812, 0.0
    %823 = vadd.xlane.f32.xlu0 %v822
    %v824 = vpop.xlane.xlu0 %823
    %v825 = vrcp.pop 32.0
    %v826 = vmul.f32 %v815, %v825
    %v827 = vmul.f32 %v818, %v825
    %v828 = vmul.f32 %v821, %v825
    %v829 = vmul.f32 %v824, %v825
    %v830 = vsub.f32 %v809, %v826
    %v831 = vsub.f32 %v810, %v827
    %v832 = vsub.f32 %v811, %v828
    %v833 = vsub.f32 %v812, %v829
    %v834 = vmul.f32 %v830, %v830
    %v835 = vmul.f32 %v831, %v831
    %v836 = vmul.f32 %v832, %v832
    %v837 = vmul.f32 %v833, %v833
    %v838 = vsel %vm365, %v834, 0.0
    %839 = vadd.xlane.f32.xlu0 %v838
    %v840 = vpop.xlane.xlu0 %839
    %v841 = vsel %vm365, %v835, 0.0
    %842 = vadd.xlane.f32.xlu0 %v841
    %v843 = vpop.xlane.xlu0 %842
    %v844 = vsel %vm365, %v836, 0.0
    %845 = vadd.xlane.f32.xlu0 %v844
    %v846 = vpop.xlane.xlu0 %845
    %v847 = vsel %vm365, %v837, 0.0
    %848 = vadd.xlane.f32.xlu0 %v847
    %v849 = vpop.xlane.xlu0 %848
    %v850 = vmul.f32 %v840, %v825
    %v851 = vmul.f32 %v843, %v825
    %v852 = vmul.f32 %v846, %v825
    %v853 = vmul.f32 %v849, %v825
    %v854 = vadd.f32 %v850, 1e-05
    %v855 = vadd.f32 %v851, 1e-05
    %v856 = vadd.f32 %v852, 1e-05
    %v857 = vadd.f32 %v853, 1e-05
    %v858 = vrsqrt.pop %v854
    %v859 = vrsqrt.pop %v855
    %v860 = vrsqrt.pop %v856
    %v861 = vrsqrt.pop %v857
    %v862 = vmul.f32 %v830, %v858
    %v863 = vmul.f32 %v831, %v859
    %v864 = vmul.f32 %v832, %v860
    %v865 = vmul.f32 %v833, %v861
    %v866 = vld [vmem:[#allocation5] sm:$0x1]
    %v868 = vlaneseq
    %v869 = vshrl.u32 %v868, 7
    %v870 = vsub.s32 0, %v869
    %v871 = vrot.slane %v866, %v870
    %v873 = vmul.f32 %v862, %v871
    %v874 = vmul.f32 %v863, %v871
    %v875 = vmul.f32 %v864, %v871
    %v876 = vmul.f32 %v865, %v871
    %v877 = vld [vmem:[#allocation7] sm:$0x1]
    %v879 = vlaneseq
    %v880 = vshrl.u32 %v879, 7
    %v881 = vsub.s32 0, %v880
    %v882 = vrot.slane %v877, %v881
    %v884 = vadd.f32 %v873, %v882
    %v885 = vadd.f32 %v874, %v882
    %v886 = vadd.f32 %v875, %v882
    %v887 = vadd.f32 %v876, %v882
    %v888 = vadd.f32 %v884, %v215
    %v889 = vadd.f32 %v885, %v220
    %v890 = vadd.f32 %v886, %v225
    %v891 = vadd.f32 %v887, %v230
    %vm892 = vcmp.ge.s32.totalorder %v282, 4
    %vm893 = vcmp.ge.s32.totalorder %v283, 4
    %vm894 = vcmp.ge.s32.totalorder %v284, 4
    %vm895 = vcmp.ge.s32.totalorder %v285, 4
    %v896 = vsel %vm892, 1, 0
    %v897 = vsel %vm893, 1, 0
    %v898 = vsel %vm894, 1, 0
    %v899 = vsel %vm895, 1, 0
    %v900 = vcvt.s32.f32 %v896
    %v901 = vcvt.s32.f32 %v897
    %v902 = vcvt.s32.f32 %v898
    %v903 = vcvt.s32.f32 %v899
    %v904 = vrot.slane %v888, 4
    %v905 = vrot.slane %v889, 4
    %v906 = vrot.slane %v890, 4
    %v907 = vrot.slane %v891, 4
    %vm908 = vcmp.lt.s32.totalorder %v234, 4
    %v909 = vsel %vm908, %v906, %v907
    %v910 = vsel %vm908, %v905, %v906
    %v911 = vsel %vm908, %v904, %v905
    %v912 = vsel %vm908, %v907, %v904
    %v913 = vmul.f32 %v912, %v900
    %v914 = vmul.f32 %v911, %v901
    %v915 = vmul.f32 %v910, %v902
    %v916 = vmul.f32 %v909, %v903
    %v917 = vpack.c.bf16 %v914, %v913
    %v918 = vpack.c.bf16 %v916, %v915
    %s919 = scalar_lea.vmem %s3, 48
    %v920 = vld [vmem:[%s919] sm:$0xf]
    %v921 = vld [vmem:[%s919 + $0x4] sm:$0xf]
    %v922 = vld [vmem:[%s919 + $0x8] sm:$0xf]
    %v923 = vld [vmem:[%s919 + $0xc] sm:$0xf]
    %s924 = scalar_lea.vmem [#allocation2], 48
    %v925 = vld [vmem:[%s924] sm:$0xf]
    %v926 = vld [vmem:[%s924 + $0x4] sm:$0xf]
    %v927 = vld [vmem:[%s924 + $0x8] sm:$0xf]
    %v928 = vld [vmem:[%s924 + $0xc] sm:$0xf]
    %v929 = vrot.slane %v888, 6
    %v930 = vrot.slane %v889, 6
    %v931 = vrot.slane %v890, 6
    %v932 = vrot.slane %v891, 6
    %v933 = vsel %vm302, %v931, %v932
    %v934 = vsel %vm302, %v930, %v931
    %v935 = vsel %vm302, %v929, %v930
    %v936 = vsel %vm302, %v932, %v929
    %v937 = vmul.f32 %v936, %v294
    %v938 = vmul.f32 %v935, %v295
    %v939 = vmul.f32 %v934, %v296
    %v940 = vmul.f32 %v933, %v297
    %v941 = vpack.c.bf16 %v938, %v937
    %v942 = vpack.c.bf16 %v940, %v939
    %s943 = scalar_lea.vmem %s3, 64
    %v944 = vld [vmem:[%s943] sm:$0xf]
    %v945 = vld [vmem:[%s943 + $0x4] sm:$0xf]
    %v946 = vld [vmem:[%s943 + $0x8] sm:$0xf]
    %v947 = vld [vmem:[%s943 + $0xc] sm:$0xf]
    %v952 = vunpack.c.l.b16 %v944
    %v953 = vunpack.c.l.b16 %v945
    %v954 = vunpack.c.l.b16 %v946
    %v955 = vunpack.c.l.b16 %v947
    %v956 = vpack.c.b16 %v953, %v952
    %v957 = vpack.c.b16 %v955, %v954
    %v961 = vsel %vm365, %v941, 0
    %v964 = vsel %vm365, %v942, 0
    %966 = vmatprep.subr.bf16.mxu0 0
    %967 = vmatpush1.bf16.msra.mxu0 0
    %968 = vmatprep.subr.bf16.mxu0 0
    %969 = vmatpush1.bf16.msra.mxu0 0
    %970 = vmatprep.subr.bf16.mxu0 0
    %971 = vmatpush1.bf16.msra.mxu0 0
    %972 = vmatprep.subr.bf16.mxu0 0
    %973 = vmatpush1.bf16.msra.mxu0 0
    %974 = vmatprep.subr.bf16.mxu0 0
    %975 = vmatpush1.bf16.msra.mxu0 0
    %976 = vmatprep.subr.bf16.mxu0 0
    %977 = vmatpush1.bf16.msra.mxu0 0
    %978 = vmatprep.subr.bf16.mxu0 0
    %979 = vmatpush1.bf16.msra.mxu0 %v957
    %980 = vmatprep.subr.bf16.mxu0 0
    %981 = vmatpush1.bf16.msra.mxu0 %v956
    %982 = vmatprep.subr.bf16.mxu0 0
    %983 = vmatpush2.bf16.msra.mxu0 0
    %984 = vmatprep.subr.bf16.mxu0 0
    %985 = vmatpush2.bf16.msra.mxu0 0
    %986 = vmatprep.subr.bf16.mxu0 0
    %987 = vmatpush2.bf16.msra.mxu0 0
    %988 = vmatprep.subr.bf16.mxu0 0
    %989 = vmatpush2.bf16.msra.mxu0 0
    %990 = vmatprep.subr.bf16.mxu0 0
    %991 = vmatpush2.bf16.msra.mxu0 0
    %992 = vmatprep.subr.bf16.mxu0 0
    %993 = vmatpush2.bf16.msra.mxu0 0
    %994 = vmatprep.subr.bf16.mxu0 0
    %995 = vmatpush2.bf16.msra.mxu0 0
    %996 = vmatprep.subr.bf16.mxu0 0
    %997 = vmatpush2.bf16.msra.mxu0 0
    %998 = vmatprep.mubr.bf16.mxu0 0
    %999 = vmatmul.mubr.bf16.gmra.mxu0 %v961
    %v1000 = vpop.f32.mrf.mxu0
    %v1001 = vadd.f32 0.0, %v1000
    %v1002 = vpop.f32.mrf.mxu0
    %v1003 = vpop.f32.mrf.mxu0
    %v1004 = vadd.f32 0.0, %v1003
    %v1005 = vpop.f32.mrf.mxu0
    %1006 = vmatprep.mubr.bf16.mxu0 0
    %1007 = vmatmul.mubr.bf16.gmra.mxu0 %v964
    %v1008 = vpop.f32.mrf.mxu0
    %v1009 = vadd.f32 0.0, %v1008
    %v1010 = vpop.f32.mrf.mxu0
    %v1011 = vpop.f32.mrf.mxu0
    %v1012 = vadd.f32 0.0, %v1011
    %v1013 = vpop.f32.mrf.mxu0
    %1014 = vdwg.mxu0
    %v1019 = vunpack.c.l.b16 %v920
    %v1020 = vunpack.c.l.b16 %v921
    %v1021 = vunpack.c.l.b16 %v922
    %v1022 = vunpack.c.l.b16 %v923
    %v1023 = vpack.c.b16 %v1020, %v1019
    %v1024 = vpack.c.b16 %v1022, %v1021
    %v1028 = vsel %vm365, %v917, 0
    %v1031 = vsel %vm365, %v918, 0
    %1033 = vmatprep.subr.bf16.mxu0 0
    %1034 = vmatpush1.bf16.msra.mxu0 0
    %1035 = vmatprep.subr.bf16.mxu0 0
    %1036 = vmatpush1.bf16.msra.mxu0 0
    %1037 = vmatprep.subr.bf16.mxu0 0
    %1038 = vmatpush1.bf16.msra.mxu0 0
    %1039 = vmatprep.subr.bf16.mxu0 0
    %1040 = vmatpush1.bf16.msra.mxu0 0
    %1041 = vmatprep.subr.bf16.mxu0 0
    %1042 = vmatpush1.bf16.msra.mxu0 0
    %1043 = vmatprep.subr.bf16.mxu0 0
    %1044 = vmatpush1.bf16.msra.mxu0 0
    %1045 = vmatprep.subr.bf16.mxu0 0
    %1046 = vmatpush1.bf16.msra.mxu0 %v1024
    %1047 = vmatprep.subr.bf16.mxu0 0
    %1048 = vmatpush1.bf16.msra.mxu0 %v1023
    %1049 = vmatprep.subr.bf16.mxu0 0
    %1050 = vmatpush2.bf16.msra.mxu0 0
    %1051 = vmatprep.subr.bf16.mxu0 0
    %1052 = vmatpush2.bf16.msra.mxu0 0
    %1053 = vmatprep.subr.bf16.mxu0 0
    %1054 = vmatpush2.bf16.msra.mxu0 0
    %1055 = vmatprep.subr.bf16.mxu0 0
    %1056 = vmatpush2.bf16.msra.mxu0 0
    %1057 = vmatprep.subr.bf16.mxu0 0
    %1058 = vmatpush2.bf16.msra.mxu0 0
    %1059 = vmatprep.subr.bf16.mxu0 0
    %1060 = vmatpush2.bf16.msra.mxu0 0
    %1061 = vmatprep.subr.bf16.mxu0 0
    %1062 = vmatpush2.bf16.msra.mxu0 0
    %1063 = vmatprep.subr.bf16.mxu0 0
    %1064 = vmatpush2.bf16.msra.mxu0 0
    %1065 = vmatprep.mubr.bf16.mxu0 0
    %1066 = vmatmul.mubr.bf16.gmra.mxu0 %v1028
    %v1067 = vpop.f32.mrf.mxu0
    %v1068 = vadd.f32 %v1001, %v1067
    %v1069 = vpop.f32.mrf.mxu0
    %v1070 = vpop.f32.mrf.mxu0
    %v1071 = vadd.f32 %v1004, %v1070
    %v1072 = vpop.f32.mrf.mxu0
    %1073 = vmatprep.mubr.bf16.mxu0 0
    %1074 = vmatmul.mubr.bf16.gmra.mxu0 %v1031
    %v1075 = vpop.f32.mrf.mxu0
    %v1076 = vadd.f32 %v1009, %v1075
    %v1077 = vpop.f32.mrf.mxu0
    %v1078 = vpop.f32.mrf.mxu0
    %v1079 = vadd.f32 %v1012, %v1078
    %v1080 = vpop.f32.mrf.mxu0
    %1081 = vdwg.mxu0
    %s1082 = scalar_lea.vmem [#allocation2], 64
    %v1083 = vld [vmem:[%s1082] sm:$0xf]
    %v1084 = vld [vmem:[%s1082 + $0x4] sm:$0xf]
    %v1085 = vld [vmem:[%s1082 + $0x8] sm:$0xf]
    %v1086 = vld [vmem:[%s1082 + $0xc] sm:$0xf]
    %v1091 = vunpack.c.l.b16 %v1083
    %v1092 = vunpack.c.l.b16 %v1084
    %v1093 = vunpack.c.l.b16 %v1085
    %v1094 = vunpack.c.l.b16 %v1086
    %v1095 = vpack.c.b16 %v1092, %v1091
    %v1096 = vpack.c.b16 %v1094, %v1093
    %1099 = vmatprep.subr.bf16.mxu0 0
    %1100 = vmatpush1.bf16.msra.mxu0 0
    %1101 = vmatprep.subr.bf16.mxu0 0
    %1102 = vmatpush1.bf16.msra.mxu0 0
    %1103 = vmatprep.subr.bf16.mxu0 0
    %1104 = vmatpush1.bf16.msra.mxu0 0
    %1105 = vmatprep.subr.bf16.mxu0 0
    %1106 = vmatpush1.bf16.msra.mxu0 0
    %1107 = vmatprep.subr.bf16.mxu0 0
    %1108 = vmatpush1.bf16.msra.mxu0 0
    %1109 = vmatprep.subr.bf16.mxu0 0
    %1110 = vmatpush1.bf16.msra.mxu0 0
    %1111 = vmatprep.subr.bf16.mxu0 0
    %1112 = vmatpush1.bf16.msra.mxu0 %v1096
    %1113 = vmatprep.subr.bf16.mxu0 0
    %1114 = vmatpush1.bf16.msra.mxu0 %v1095
    %1115 = vmatprep.subr.bf16.mxu0 0
    %1116 = vmatpush2.bf16.msra.mxu0 0
    %1117 = vmatprep.subr.bf16.mxu0 0
    %1118 = vmatpush2.bf16.msra.mxu0 0
    %1119 = vmatprep.subr.bf16.mxu0 0
    %1120 = vmatpush2.bf16.msra.mxu0 0
    %1121 = vmatprep.subr.bf16.mxu0 0
    %1122 = vmatpush2.bf16.msra.mxu0 0
    %1123 = vmatprep.subr.bf16.mxu0 0
    %1124 = vmatpush2.bf16.msra.mxu0 0
    %1125 = vmatprep.subr.bf16.mxu0 0
    %1126 = vmatpush2.bf16.msra.mxu0 0
    %1127 = vmatprep.subr.bf16.mxu0 0
    %1128 = vmatpush2.bf16.msra.mxu0 0
    %1129 = vmatprep.subr.bf16.mxu0 0
    %1130 = vmatpush2.bf16.msra.mxu0 0
    %1131 = vmatprep.mubr.bf16.mxu0 0
    %1132 = vmatmul.mubr.bf16.gmra.mxu0 %v961
    %v1133 = vpop.f32.mrf.mxu0
    %v1134 = vadd.f32 0.0, %v1133
    %v1135 = vpop.f32.mrf.mxu0
    %v1136 = vpop.f32.mrf.mxu0
    %v1137 = vadd.f32 0.0, %v1136
    %v1138 = vpop.f32.mrf.mxu0
    %1139 = vmatprep.mubr.bf16.mxu0 0
    %1140 = vmatmul.mubr.bf16.gmra.mxu0 %v964
    %v1141 = vpop.f32.mrf.mxu0
    %v1142 = vadd.f32 0.0, %v1141
    %v1143 = vpop.f32.mrf.mxu0
    %v1144 = vpop.f32.mrf.mxu0
    %v1145 = vadd.f32 0.0, %v1144
    %v1146 = vpop.f32.mrf.mxu0
    %1147 = vdwg.mxu0
    %v1152 = vunpack.c.l.b16 %v925
    %v1153 = vunpack.c.l.b16 %v926
    %v1154 = vunpack.c.l.b16 %v927
    %v1155 = vunpack.c.l.b16 %v928
    %v1156 = vpack.c.b16 %v1153, %v1152
    %v1157 = vpack.c.b16 %v1155, %v1154
    %1160 = vmatprep.subr.bf16.mxu0 0
    %1161 = vmatpush1.bf16.msra.mxu0 0
    %1162 = vmatprep.subr.bf16.mxu0 0
    %1163 = vmatpush1.bf16.msra.mxu0 0
    %1164 = vmatprep.subr.bf16.mxu0 0
    %1165 = vmatpush1.bf16.msra.mxu0 0
    %1166 = vmatprep.subr.bf16.mxu0 0
    %1167 = vmatpush1.bf16.msra.mxu0 0
    %1168 = vmatprep.subr.bf16.mxu0 0
    %1169 = vmatpush1.bf16.msra.mxu0 0
    %1170 = vmatprep.subr.bf16.mxu0 0
    %1171 = vmatpush1.bf16.msra.mxu0 0
    %1172 = vmatprep.subr.bf16.mxu0 0
    %1173 = vmatpush1.bf16.msra.mxu0 %v1157
    %1174 = vmatprep.subr.bf16.mxu0 0
    %1175 = vmatpush1.bf16.msra.mxu0 %v1156
    %1176 = vmatprep.subr.bf16.mxu0 0
    %1177 = vmatpush2.bf16.msra.mxu0 0
    %1178 = vmatprep.subr.bf16.mxu0 0
    %1179 = vmatpush2.bf16.msra.mxu0 0
    %1180 = vmatprep.subr.bf16.mxu0 0
    %1181 = vmatpush2.bf16.msra.mxu0 0
    %1182 = vmatprep.subr.bf16.mxu0 0
    %1183 = vmatpush2.bf16.msra.mxu0 0
    %1184 = vmatprep.subr.bf16.mxu0 0
    %1185 = vmatpush2.bf16.msra.mxu0 0
    %1186 = vmatprep.subr.bf16.mxu0 0
    %1187 = vmatpush2.bf16.msra.mxu0 0
    %1188 = vmatprep.subr.bf16.mxu0 0
    %1189 = vmatpush2.bf16.msra.mxu0 0
    %1190 = vmatprep.subr.bf16.mxu0 0
    %1191 = vmatpush2.bf16.msra.mxu0 0
    %1192 = vmatprep.mubr.bf16.mxu0 0
    %1193 = vmatmul.mubr.bf16.gmra.mxu0 %v1028
    %v1194 = vpop.f32.mrf.mxu0
    %v1195 = vadd.f32 %v1134, %v1194
    %v1196 = vpop.f32.mrf.mxu0
    %v1197 = vpop.f32.mrf.mxu0
    %v1198 = vadd.f32 %v1137, %v1197
    %v1199 = vpop.f32.mrf.mxu0
    %1200 = vmatprep.mubr.bf16.mxu0 0
    %1201 = vmatmul.mubr.bf16.gmra.mxu0 %v1031
    %v1202 = vpop.f32.mrf.mxu0
    %v1203 = vadd.f32 %v1142, %v1202
    %v1204 = vpop.f32.mrf.mxu0
    %v1205 = vpop.f32.mrf.mxu0
    %v1206 = vadd.f32 %v1145, %v1205
    %v1207 = vpop.f32.mrf.mxu0
    %1208 = vdwg.mxu0
    %v1209 = vpack.c.bf16 %v889, %v888
    %v1210 = vpack.c.bf16 %v891, %v890
    %s1211 = scalar_lea.vmem %s3, 80
    %v1212 = vld [vmem:[%s1211] sm:$0xf]
    %v1213 = vld [vmem:[%s1211 + $0x4] sm:$0xf]
    %v1214 = vld [vmem:[%s1211 + $0x8] sm:$0xf]
    %v1215 = vld [vmem:[%s1211 + $0xc] sm:$0xf]
    %v1220 = vunpack.c.l.b16 %v1212
    %v1221 = vunpack.c.l.b16 %v1213
    %v1222 = vunpack.c.l.b16 %v1214
    %v1223 = vunpack.c.l.b16 %v1215
    %v1224 = vpack.c.b16 %v1221, %v1220
    %v1225 = vpack.c.b16 %v1223, %v1222
    %v1229 = vsel %vm365, %v1209, 0
    %v1232 = vsel %vm365, %v1210, 0
    %1234 = vmatprep.subr.bf16.mxu0 0
    %1235 = vmatpush1.bf16.msra.mxu0 0
    %1236 = vmatprep.subr.bf16.mxu0 0
    %1237 = vmatpush1.bf16.msra.mxu0 0
    %1238 = vmatprep.subr.bf16.mxu0 0
    %1239 = vmatpush1.bf16.msra.mxu0 0
    %1240 = vmatprep.subr.bf16.mxu0 0
    %1241 = vmatpush1.bf16.msra.mxu0 0
    %1242 = vmatprep.subr.bf16.mxu0 0
    %1243 = vmatpush1.bf16.msra.mxu0 0
    %1244 = vmatprep.subr.bf16.mxu0 0
    %1245 = vmatpush1.bf16.msra.mxu0 0
    %1246 = vmatprep.subr.bf16.mxu0 0
    %1247 = vmatpush1.bf16.msra.mxu0 %v1225
    %1248 = vmatprep.subr.bf16.mxu0 0
    %1249 = vmatpush1.bf16.msra.mxu0 %v1224
    %1250 = vmatprep.subr.bf16.mxu0 0
    %1251 = vmatpush2.bf16.msra.mxu0 0
    %1252 = vmatprep.subr.bf16.mxu0 0
    %1253 = vmatpush2.bf16.msra.mxu0 0
    %1254 = vmatprep.subr.bf16.mxu0 0
    %1255 = vmatpush2.bf16.msra.mxu0 0
    %1256 = vmatprep.subr.bf16.mxu0 0
    %1257 = vmatpush2.bf16.msra.mxu0 0
    %1258 = vmatprep.subr.bf16.mxu0 0
    %1259 = vmatpush2.bf16.msra.mxu0 0
    %1260 = vmatprep.subr.bf16.mxu0 0
    %1261 = vmatpush2.bf16.msra.mxu0 0
    %1262 = vmatprep.subr.bf16.mxu0 0
    %1263 = vmatpush2.bf16.msra.mxu0 0
    %1264 = vmatprep.subr.bf16.mxu0 0
    %1265 = vmatpush2.bf16.msra.mxu0 0
    %1266 = vmatprep.mubr.bf16.mxu0 0
    %1267 = vmatmul.mubr.bf16.gmra.mxu0 %v1229
    %v1268 = vpop.f32.mrf.mxu0
    %v1269 = vadd.f32 0.0, %v1268
    %v1270 = vpop.f32.mrf.mxu0
    %v1271 = vpop.f32.mrf.mxu0
    %v1272 = vadd.f32 0.0, %v1271
    %v1273 = vpop.f32.mrf.mxu0
    %1274 = vmatprep.mubr.bf16.mxu0 0
    %1275 = vmatmul.mubr.bf16.gmra.mxu0 %v1232
    %v1276 = vpop.f32.mrf.mxu0
    %v1277 = vadd.f32 0.0, %v1276
    %v1278 = vpop.f32.mrf.mxu0
    %v1279 = vpop.f32.mrf.mxu0
    %v1280 = vadd.f32 0.0, %v1279
    %v1281 = vpop.f32.mrf.mxu0
    %1282 = vdwg.mxu0
    %v1283 = vadd.f32 %v1068, %v1269
    %v1284 = vadd.f32 %v1071, %v1272
    %v1285 = vadd.f32 %v1076, %v1277
    %v1286 = vadd.f32 %v1079, %v1280
    %s1287 = scalar_lea.vmem [#allocation2], 80
    %v1288 = vld [vmem:[%s1287] sm:$0xf]
    %v1289 = vld [vmem:[%s1287 + $0x4] sm:$0xf]
    %v1290 = vld [vmem:[%s1287 + $0x8] sm:$0xf]
    %v1291 = vld [vmem:[%s1287 + $0xc] sm:$0xf]
    %v1296 = vunpack.c.l.b16 %v1288
    %v1297 = vunpack.c.l.b16 %v1289
    %v1298 = vunpack.c.l.b16 %v1290
    %v1299 = vunpack.c.l.b16 %v1291
    %v1300 = vpack.c.b16 %v1297, %v1296
    %v1301 = vpack.c.b16 %v1299, %v1298
    %1304 = vmatprep.subr.bf16.mxu0 0
    %1305 = vmatpush1.bf16.msra.mxu0 0
    %1306 = vmatprep.subr.bf16.mxu0 0
    %1307 = vmatpush1.bf16.msra.mxu0 0
    %1308 = vmatprep.subr.bf16.mxu0 0
    %1309 = vmatpush1.bf16.msra.mxu0 0
    %1310 = vmatprep.subr.bf16.mxu0 0
    %1311 = vmatpush1.bf16.msra.mxu0 0
    %1312 = vmatprep.subr.bf16.mxu0 0
    %1313 = vmatpush1.bf16.msra.mxu0 0
    %1314 = vmatprep.subr.bf16.mxu0 0
    %1315 = vmatpush1.bf16.msra.mxu0 0
    %1316 = vmatprep.subr.bf16.mxu0 0
    %1317 = vmatpush1.bf16.msra.mxu0 %v1301
    %1318 = vmatprep.subr.bf16.mxu0 0
    %1319 = vmatpush1.bf16.msra.mxu0 %v1300
    %1320 = vmatprep.subr.bf16.mxu0 0
    %1321 = vmatpush2.bf16.msra.mxu0 0
    %1322 = vmatprep.subr.bf16.mxu0 0
    %1323 = vmatpush2.bf16.msra.mxu0 0
    %1324 = vmatprep.subr.bf16.mxu0 0
    %1325 = vmatpush2.bf16.msra.mxu0 0
    %1326 = vmatprep.subr.bf16.mxu0 0
    %1327 = vmatpush2.bf16.msra.mxu0 0
    %1328 = vmatprep.subr.bf16.mxu0 0
    %1329 = vmatpush2.bf16.msra.mxu0 0
    %1330 = vmatprep.subr.bf16.mxu0 0
    %1331 = vmatpush2.bf16.msra.mxu0 0
    %1332 = vmatprep.subr.bf16.mxu0 0
    %1333 = vmatpush2.bf16.msra.mxu0 0
    %1334 = vmatprep.subr.bf16.mxu0 0
    %1335 = vmatpush2.bf16.msra.mxu0 0
    %1336 = vmatprep.mubr.bf16.mxu0 0
    %1337 = vmatmul.mubr.bf16.gmra.mxu0 %v1229
    %v1338 = vpop.f32.mrf.mxu0
    %v1339 = vadd.f32 0.0, %v1338
    %v1340 = vpop.f32.mrf.mxu0
    %v1341 = vpop.f32.mrf.mxu0
    %v1342 = vadd.f32 0.0, %v1341
    %v1343 = vpop.f32.mrf.mxu0
    %1344 = vmatprep.mubr.bf16.mxu0 0
    %1345 = vmatmul.mubr.bf16.gmra.mxu0 %v1232
    %v1346 = vpop.f32.mrf.mxu0
    %v1347 = vadd.f32 0.0, %v1346
    %v1348 = vpop.f32.mrf.mxu0
    %v1349 = vpop.f32.mrf.mxu0
    %v1350 = vadd.f32 0.0, %v1349
    %v1351 = vpop.f32.mrf.mxu0
    %1352 = vdwg.mxu0
    %v1353 = vadd.f32 %v1195, %v1339
    %v1354 = vadd.f32 %v1198, %v1342
    %v1355 = vadd.f32 %v1203, %v1347
    %v1356 = vadd.f32 %v1206, %v1350
    %s1357 = scalar_lea.vmem %s5, 1
    %v1358 = vld [vmem:[%s1357] sm:$0x1]
    %v1360 = vlaneseq
    %v1361 = vshrl.u32 %v1360, 7
    %v1362 = vsub.s32 0, %v1361
    %v1363 = vrot.slane %v1358, %v1362
    %v1365 = vadd.f32 %v1283, %v1363
    %v1366 = vadd.f32 %v1284, %v1363
    %v1367 = vadd.f32 %v1285, %v1363
    %v1368 = vadd.f32 %v1286, %v1363
    %s1369 = scalar_lea.vmem %s6, 1
    %v1370 = vld [vmem:[%s1369] sm:$0x1]
    %v1372 = vlaneseq
    %v1373 = vshrl.u32 %v1372, 7
    %v1374 = vsub.s32 0, %v1373
    %v1375 = vrot.slane %v1370, %v1374
    %v1377 = vadd.f32 %v1353, %v1375
    %v1378 = vadd.f32 %v1354, %v1375
    %v1379 = vadd.f32 %v1355, %v1375
    %v1380 = vadd.f32 %v1356, %v1375
    %v1381 = vxor.u32 %v1377, 2147483648
    %v1382 = vxor.u32 %v1378, 2147483648
    %v1383 = vxor.u32 %v1379, 2147483648
    %v1384 = vxor.u32 %v1380, 2147483648
    %v1385 = vmul.f32 %v1381, 1.442695
    %v1386 = vpow.pop %v1385
    %v1387 = vmul.f32 %v1382, 1.442695
    %v1388 = vpow.pop %v1387
    %v1389 = vmul.f32 %v1383, 1.442695
    %v1390 = vpow.pop %v1389
    %v1391 = vmul.f32 %v1384, 1.442695
    %v1392 = vpow.pop %v1391
    %v1393 = vadd.f32 %v1386, 1.0
    %v1394 = vadd.f32 %v1388, 1.0
    %v1395 = vadd.f32 %v1390, 1.0
    %v1396 = vadd.f32 %v1392, 1.0
    %v1397 = vrcp.pop %v1393
    %v1398 = vmul.f32 1.0, %v1397
    %v1399 = vrcp.pop %v1394
    %v1400 = vmul.f32 1.0, %v1399
    %v1401 = vrcp.pop %v1395
    %v1402 = vmul.f32 1.0, %v1401
    %v1403 = vrcp.pop %v1396
    %v1404 = vmul.f32 1.0, %v1403
    %v1405 = vmul.f32 %v1365, %v1398
    %v1406 = vmul.f32 %v1366, %v1400
    %v1407 = vmul.f32 %v1367, %v1402
    %v1408 = vmul.f32 %v1368, %v1404
    %v1409 = vsel %vm365, %v1405, 0.0
    %1410 = vadd.xlane.f32.xlu0 %v1409
    %v1411 = vpop.xlane.xlu0 %1410
    %v1412 = vsel %vm365, %v1406, 0.0
    %1413 = vadd.xlane.f32.xlu0 %v1412
    %v1414 = vpop.xlane.xlu0 %1413
    %v1415 = vsel %vm365, %v1407, 0.0
    %1416 = vadd.xlane.f32.xlu0 %v1415
    %v1417 = vpop.xlane.xlu0 %1416
    %v1418 = vsel %vm365, %v1408, 0.0
    %1419 = vadd.xlane.f32.xlu0 %v1418
    %v1420 = vpop.xlane.xlu0 %1419
    %v1421 = vmul.f32 %v1411, %v825
    %v1422 = vmul.f32 %v1414, %v825
    %v1423 = vmul.f32 %v1417, %v825
    %v1424 = vmul.f32 %v1420, %v825
    %v1425 = vsub.f32 %v1405, %v1421
    %v1426 = vsub.f32 %v1406, %v1422
    %v1427 = vsub.f32 %v1407, %v1423
    %v1428 = vsub.f32 %v1408, %v1424
    %v1429 = vmul.f32 %v1425, %v1425
    %v1430 = vmul.f32 %v1426, %v1426
    %v1431 = vmul.f32 %v1427, %v1427
    %v1432 = vmul.f32 %v1428, %v1428
    %v1433 = vsel %vm365, %v1429, 0.0
    %1434 = vadd.xlane.f32.xlu0 %v1433
    %v1435 = vpop.xlane.xlu0 %1434
    %v1436 = vsel %vm365, %v1430, 0.0
    %1437 = vadd.xlane.f32.xlu0 %v1436
    %v1438 = vpop.xlane.xlu0 %1437
    %v1439 = vsel %vm365, %v1431, 0.0
    %1440 = vadd.xlane.f32.xlu0 %v1439
    %v1441 = vpop.xlane.xlu0 %1440
    %v1442 = vsel %vm365, %v1432, 0.0
    %1443 = vadd.xlane.f32.xlu0 %v1442
    %v1444 = vpop.xlane.xlu0 %1443
    %v1445 = vmul.f32 %v1435, %v825
    %v1446 = vmul.f32 %v1438, %v825
    %v1447 = vmul.f32 %v1441, %v825
    %v1448 = vmul.f32 %v1444, %v825
    %v1449 = vadd.f32 %v1445, 1e-05
    %v1450 = vadd.f32 %v1446, 1e-05
    %v1451 = vadd.f32 %v1447, 1e-05
    %v1452 = vadd.f32 %v1448, 1e-05
    %v1453 = vrsqrt.pop %v1449
    %v1454 = vrsqrt.pop %v1450
    %v1455 = vrsqrt.pop %v1451
    %v1456 = vrsqrt.pop %v1452
    %v1457 = vmul.f32 %v1425, %v1453
    %v1458 = vmul.f32 %v1426, %v1454
    %v1459 = vmul.f32 %v1427, %v1455
    %v1460 = vmul.f32 %v1428, %v1456
    %s1461 = scalar_lea.vmem [#allocation5], 1
    %v1462 = vld [vmem:[%s1461] sm:$0x1]
    %v1464 = vlaneseq
    %v1465 = vshrl.u32 %v1464, 7
    %v1466 = vsub.s32 0, %v1465
    %v1467 = vrot.slane %v1462, %v1466
    %v1469 = vmul.f32 %v1457, %v1467
    %v1470 = vmul.f32 %v1458, %v1467
    %v1471 = vmul.f32 %v1459, %v1467
    %v1472 = vmul.f32 %v1460, %v1467
    %s1473 = scalar_lea.vmem [#allocation7], 1
    %v1474 = vld [vmem:[%s1473] sm:$0x1]
    %v1476 = vlaneseq
    %v1477 = vshrl.u32 %v1476, 7
    %v1478 = vsub.s32 0, %v1477
    %v1479 = vrot.slane %v1474, %v1478
    %v1481 = vadd.f32 %v1469, %v1479
    %v1482 = vadd.f32 %v1470, %v1479
    %v1483 = vadd.f32 %v1471, %v1479
    %v1484 = vadd.f32 %v1472, %v1479
    %v1485 = vadd.f32 %v1481, %v888
    %v1486 = vadd.f32 %v1482, %v889
    %v1487 = vadd.f32 %v1483, %v890
    %v1488 = vadd.f32 %v1484, %v891
    %v1489 = vpack.c.bf16 %v1486, %v1485
    %v1490 = vpack.c.bf16 %v1488, %v1487
    %v1491 = vld [vmem:[%s9] sm:$0xf]
    %v1492 = vld [vmem:[%s9 + $0x4] sm:$0xf]
    %v1493 = vld [vmem:[%s9 + $0x8] sm:$0xf]
    %v1494 = vld [vmem:[%s9 + $0xc] sm:$0xf]
    %v1495 = vld [vmem:[#allocation8] sm:$0x1]
    %v1497 = vlaneseq
    %v1498 = vshrl.u32 %v1497, 7
    %v1499 = vsub.s32 0, %v1498
    %v1500 = vrot.slane %v1495, %v1499
    %v1506 = vunpack.c.l.b16 %v1491
    %v1507 = vunpack.c.l.b16 %v1492
    %v1508 = vunpack.c.l.b16 %v1493
    %v1509 = vunpack.c.l.b16 %v1494
    %v1510 = vpack.c.b16 %v1507, %v1506
    %v1511 = vpack.c.b16 %v1509, %v1508
    %v1515 = vsel %vm365, %v1489, 0
    %v1518 = vsel %vm365, %v1490, 0
    %1520 = vmatprep.subr.bf16.mxu0 0
    %1521 = vmatpush1.bf16.msra.mxu0 0
    %1522 = vmatprep.subr.bf16.mxu0 0
    %1523 = vmatpush1.bf16.msra.mxu0 0
    %1524 = vmatprep.subr.bf16.mxu0 0
    %1525 = vmatpush1.bf16.msra.mxu0 0
    %1526 = vmatprep.subr.bf16.mxu0 0
    %1527 = vmatpush1.bf16.msra.mxu0 0
    %1528 = vmatprep.subr.bf16.mxu0 0
    %1529 = vmatpush1.bf16.msra.mxu0 0
    %1530 = vmatprep.subr.bf16.mxu0 0
    %1531 = vmatpush1.bf16.msra.mxu0 0
    %1532 = vmatprep.subr.bf16.mxu0 0
    %1533 = vmatpush1.bf16.msra.mxu0 %v1511
    %1534 = vmatprep.subr.bf16.mxu0 0
    %1535 = vmatpush1.bf16.msra.mxu0 %v1510
    %1536 = vmatprep.subr.bf16.mxu0 0
    %1537 = vmatpush2.bf16.msra.mxu0 0
    %1538 = vmatprep.subr.bf16.mxu0 0
    %1539 = vmatpush2.bf16.msra.mxu0 0
    %1540 = vmatprep.subr.bf16.mxu0 0
    %1541 = vmatpush2.bf16.msra.mxu0 0
    %1542 = vmatprep.subr.bf16.mxu0 0
    %1543 = vmatpush2.bf16.msra.mxu0 0
    %1544 = vmatprep.subr.bf16.mxu0 0
    %1545 = vmatpush2.bf16.msra.mxu0 0
    %1546 = vmatprep.subr.bf16.mxu0 0
    %1547 = vmatpush2.bf16.msra.mxu0 0
    %1548 = vmatprep.subr.bf16.mxu0 0
    %1549 = vmatpush2.bf16.msra.mxu0 0
    %1550 = vmatprep.subr.bf16.mxu0 0
    %1551 = vmatpush2.bf16.msra.mxu0 0
    %1552 = vmatprep.mubr.bf16.mxu0 0
    %1553 = vmatmul.mubr.bf16.gmra.mxu0 %v1515
    %v1554 = vpop.f32.mrf.mxu0
    %v1555 = vadd.f32 %v1500, %v1554
    %v1556 = vpop.f32.mrf.mxu0
    %v1557 = vpop.f32.mrf.mxu0
    %v1558 = vadd.f32 %v1500, %v1557
    %v1559 = vpop.f32.mrf.mxu0
    %1560 = vmatprep.mubr.bf16.mxu0 0
    %1561 = vmatmul.mubr.bf16.gmra.mxu0 %v1518
    %v1562 = vpop.f32.mrf.mxu0
    %v1563 = vadd.f32 %v1500, %v1562
    %v1564 = vpop.f32.mrf.mxu0
    %v1565 = vpop.f32.mrf.mxu0
    %v1566 = vadd.f32 %v1500, %v1565
    %v1567 = vpop.f32.mrf.mxu0
    %1568 = vdwg.mxu0
    %1569 = vst [vmem:[#allocation10] sm:$0xff] %v1555
    %1570 = vst [vmem:[#allocation10 + $0x8] sm:$0xff] %v1558
    %1571 = vst [vmem:[#allocation10 + $0x10] sm:$0xff] %v1563
    %1572 = vst [vmem:[#allocation10 + $0x18] sm:$0xff] %v1566
    // Predicated region
    $region62: #{cnn_lm_forward_pallas.1} parent=1 // pred_check
      _
    $region63: #{cnn_lm_forward_pallas.1} parent=1 // pred_check_branch
      %1574 = sbr.rel (0) target = $region65
    $region64: #{cnn_lm_forward_pallas.1} parent=1 // pred_region
      %s1576 = ssub.s32 512, 512
      %1577 = vsyncadd [#allocation4], %s1576
      %s1578 = sshll.u32 [#allocation10], 4
      %s1579 = int_to_ptr.vmem [resolvable:$true] %s1578
      %1584 = dma.vmem_to_hbm [thread:$0]  %s1579, 512, %s11, [#allocation4], 128, 128, 8
    $region65: #{cnn_lm_forward_pallas.1} parent=1 // pred_fallthru
      _
    // Predicated region
    $region66: #{cnn_lm_forward_pallas.1} parent=1 // pred_check
      _
    $region67: #{cnn_lm_forward_pallas.1} parent=1 // pred_check_branch
      %1586 = sbr.rel (0) target = $region69
    $region68: #{cnn_lm_forward_pallas.1} parent=1 // pred_region
      %1587 = dma.done [#allocation4], 512
    $region69: #{cnn_lm_forward_pallas.1} parent=1 // pred_fallthru
      _
    %1588 = vsyncpa [#allocation3], 1
    %1589 = vsyncpa [#allocation6], 1
    %1590 = vsyncpa [#allocation9], 1
    %1591 = vsyncpa [#allocation4], 1

</llo_original>
